<compile_context>
chip_gen: v5e
topology: v5e:2x2
jax: 0.10.0
libtpu: 0.0.40
codegen_flags: <defaults>
</compile_context>

<pallas_src>
import functools
import numpy as np
import jax
import jax.numpy as jnp
from jax.experimental import pallas as pl
from jax.experimental.pallas import tpu as pltpu


# Rows of the packed (8, d_model) per-layer vector tensor.
_LN1_G, _LN1_B, _LN2_G, _LN2_B, _B2 = 0, 1, 2, 3, 4


# ----------------------------------------------------------------------------
# Sinusoid positional table (exactly as in PositionalEncoding)
# ----------------------------------------------------------------------------
def sinusoid_encoding_table(n_position, d_hid):
    pos = np.arange(n_position, dtype=np.float64)[:, None]
    hid = np.arange(d_hid, dtype=np.float64)[None, :]
    angle = pos / np.power(10000.0, 2.0 * (np.floor(hid / 2.0)) / d_hid)
    table = np.empty((n_position, d_hid), dtype=np.float32)
    table[:, 0::2] = np.sin(angle[:, 0::2])
    table[:, 1::2] = np.cos(angle[:, 1::2])
    return jnp.asarray(table)  # (n_position, d_hid)


def _layer_norm(x, gamma, beta, eps=1e-6):
    mean = jnp.mean(x, axis=-1, keepdims=True)
    var = jnp.mean((x - mean) ** 2, axis=-1, keepdims=True)
    inv = jax.lax.rsqrt(var + eps)
    return (x - mean) * inv * gamma + beta


# ----------------------------------------------------------------------------
# Fused kernel: positional add (layer 0) + one full encoder layer per step.
# grid = (B // batch_block, n_layers); activation carried in VMEM scratch.
# ----------------------------------------------------------------------------
def fused_encoder_kernel(x_ref, bias_ref, pos_ref,
                         wqkv_ref, wo_ref, w1_ref, b1_ref, w2_ref, vecs_ref,
                         o_ref, carry_ref, *, n_head, d_k, d_v, batch_block):
    layer = pl.program_id(1)
    n_layers = pl.num_programs(1)
    H = n_head
    Bblk = batch_block

    # Layer 0: positional encoding (dropout == identity at inference).
    @pl.when(layer == 0)
    def _():
        carry_ref[...] = x_ref[...] + pos_ref[...]

    x = carry_ref[...]                                    # (Bblk*S, D) f32
    BS, D = x.shape
    S = BS // Bblk
    bf = jnp.bfloat16
    x_bf = x.astype(bf)

    # ---- fused QKV projection: one weight DMA, H matmuls, N = 2*d_k + d_v ---
    x_h = jnp.broadcast_to(x_bf[None], (H, BS, D))        # (H, BS, D) bf16
    qkv = jnp.einsum('hmd,hdk->hmk', x_h, wqkv_ref[0],
                     preferred_element_type=jnp.float32)  # (H, BS, 2dk+dv)

    def heads_to_batch(t, d):
        # (H, Bblk*S, d) -> (H*Bblk, S, d); leading/sublane-compatible reshape
        return t.reshape(H * Bblk, S, d)

    q = heads_to_batch(qkv[:, :, :d_k].astype(bf), d_k)
    k = heads_to_batch(qkv[:, :, d_k:2 * d_k].astype(bf), d_k)
    v = heads_to_batch(qkv[:, :, 2 * d_k:].astype(bf), d_v)

    # ---- scaled dot-product attention (head x batch folded into batch dim) --
    scale = 1.0 / (d_k ** 0.5)
    scores = jnp.einsum('bqd,bkd->bqk', q, k,
                        preferred_element_type=jnp.float32) * scale  # (H*Bblk,S,S)
    scores = scores + bias_ref[0]          # additive key-padding bias (precomputed)

    scores = scores - jnp.max(scores, axis=-1, keepdims=True)
    p = jnp.exp(scores)
    p = p * pl.reciprocal(jnp.sum(p, axis=-1, keepdims=True), approx=True)

    ctx = jnp.einsum('bqk,bkd->bqd', p.astype(bf), v,
                     preferred_element_type=jnp.float32)  # (H*Bblk, S, d_v)
    ctx = ctx.reshape(H, BS, d_v)

    # Output projection; head reduction over the leading axis.
    # TODO(synk): a single (BS, H*d_v) x (H*d_v, D) matmul would put the head
    # reduction on the MXU K dim, but needs a sublane<->major transpose;
    # keeping the validated head-batched form for safe Mosaic lowering.
    out_h = jnp.einsum('hmd,hdn->hmn', ctx.astype(bf), wo_ref[0],
                       preferred_element_type=jnp.float32)  # (H, BS, D)
    attn_out = jnp.sum(out_h, axis=0)                        # (BS, D)

    vecs = vecs_ref[0]                                       # (8, D) f32
    h1 = _layer_norm(attn_out + x,
                     vecs[_LN1_G:_LN1_G + 1], vecs[_LN1_B:_LN1_B + 1])

    # ---- position-wise feed-forward ----------------------------------------
    f = jnp.dot(h1.astype(bf), w1_ref[0],
                preferred_element_type=jnp.float32) + b1_ref[0]
    f = jnp.maximum(f, 0.0)
    f = jnp.dot(f.astype(bf), w2_ref[0],
                preferred_element_type=jnp.float32) + vecs[_B2:_B2 + 1]
    h2 = _layer_norm(f + h1, vecs[_LN2_G:_LN2_G + 1], vecs[_LN2_B:_LN2_B + 1])

    # TODO(synk): on v6e/v7x a bf16 carry would halve this scratch; kept f32
    # so the same kernel is numerically safe on v5e (no bf16 VPU).
    carry_ref[...] = h2

    # Output store only after the last layer (vst is the scarcest slot).
    @pl.when(layer == n_layers - 1)
    def _():
        o_ref[...] = h2


# ----------------------------------------------------------------------------
# Parameter init (per-layer dicts, f32) and stacking / packing for the kernel.
# ----------------------------------------------------------------------------
def init_encoder_params(key, *, n_layers, n_head, d_k, d_v, d_model, d_inner):
    layers = []
    for _ in range(n_layers):
        keys = jax.random.split(key, 7)
        key = keys[0]
        layers.append(dict(
            wq=0.02 * jax.random.normal(keys[1], (d_model, n_head * d_k), jnp.float32),
            wk=0.02 * jax.random.normal(keys[2], (d_model, n_head * d_k), jnp.float32),
            wv=0.02 * jax.random.normal(keys[3], (d_model, n_head * d_v), jnp.float32),
            wo=0.02 * jax.random.normal(keys[4], (n_head * d_v, d_model), jnp.float32),
            ln1_g=jnp.ones((1, d_model), jnp.float32),
            ln1_b=jnp.zeros((1, d_model), jnp.float32),
            w1=0.02 * jax.random.normal(keys[5], (d_model, d_inner), jnp.float32),
            b1=jnp.zeros((1, d_inner), jnp.float32),
            w2=0.02 * jax.random.normal(keys[6], (d_inner, d_model), jnp.float32),
            b2=jnp.zeros((1, d_model), jnp.float32),
            ln2_g=jnp.ones((1, d_model), jnp.float32),
            ln2_b=jnp.zeros((1, d_model), jnp.float32),
        ))
    return layers


def stack_layer_params(layers, *, n_head, d_k, d_v):
    L = len(layers)
    d_model = layers[0]["wq"].shape[0]
    bf = jnp.bfloat16

    def stack(name):
        return jnp.stack([p[name] for p in layers], axis=0)

    # Fused, head-major QKV weight: (L, H, D, 2*d_k + d_v).
    wq = stack("wq").reshape(L, d_model, n_head, d_k).transpose(0, 2, 1, 3)
    wk = stack("wk").reshape(L, d_model, n_head, d_k).transpose(0, 2, 1, 3)
    wv = stack("wv").reshape(L, d_model, n_head, d_v).transpose(0, 2, 1, 3)
    wqkv = jnp.concatenate([wq, wk, wv], axis=-1)

    wo = stack("wo").reshape(L, n_head, d_v, d_model)

    # Packed small per-layer vectors: (L, 8, D)  (rows 5..7 are padding).
    vecs = jnp.zeros((L, 8, d_model), jnp.float32)
    vecs = vecs.at[:, _LN1_G].set(stack("ln1_g")[:, 0])
    vecs = vecs.at[:, _LN1_B].set(stack("ln1_b")[:, 0])
    vecs = vecs.at[:, _LN2_G].set(stack("ln2_g")[:, 0])
    vecs = vecs.at[:, _LN2_B].set(stack("ln2_b")[:, 0])
    vecs = vecs.at[:, _B2].set(stack("b2")[:, 0])

    return dict(
        wqkv=wqkv.astype(bf),
        wo=wo.astype(bf),
        w1=stack("w1").astype(bf),
        b1=stack("b1"),                 # (L, 1, d_inner) f32
        w2=stack("w2").astype(bf),
        vecs=vecs,                      # (L, 8, d_model) f32
    )


# ----------------------------------------------------------------------------
# Wrapper: one fused pallas_call over grid (B // batch_block, n_layers)
# ----------------------------------------------------------------------------
def _pick_batch_block(B, S, max_m=256):
    """Largest divisor of B with batch_block*S <= max_m (MXU M target)."""
    bb = 1
    for cand in range(1, B + 1):
        if B % cand == 0 and cand * S <= max_m:
            bb = cand
    return bb


def _vmem_limit_bytes(Bblk, S, D, d_inner, H, d_k, d_v):
    BS = Bblk * S
    Kh = 2 * d_k + d_v
    bf2, f4 = 2, 4
    # double-buffered per-layer weights (bf16) + packed vectors (f32)
    w = 2 * ((H * D * Kh + H * d_v * D + D * d_inner + d_inner * D) * bf2
             + (8 * D + d_inner) * f4)
    # resident activation blocks (input, output, carry, bias, pos)
    act = (3 * BS * D + H * Bblk * S + BS * D) * f4
    # transient intermediates (qkv, scores, probs, ctx, head-proj, ffn hidden)
    tmp = (H * BS * Kh + 2 * H * Bblk * S * S + H * BS * d_v
           + H * BS * D + BS * d_inner) * f4
    est = w + act + tmp
    # 2x headroom for compiler scratch / spills, clamped to sane bounds
    # (stays well under v7x's 64 MiB physical VMEM at demo sizes).
    return int(min(max(2 * est, 32 * 1024 * 1024), 120 * 1024 * 1024))


def encoder_forward(src_seq, src_mask, stacked, pos_table, *,
                    n_layers, n_head, d_k, d_v, batch_block=None):
    B, S, D = src_seq.shape
    H = n_head
    Kh = 2 * d_k + d_v
    d_inner = stacked["w1"].shape[-1]

    if batch_block is None:
        batch_block = _pick_batch_block(B, S)
    Bblk = batch_block
    assert B % Bblk == 0 and (Bblk * S) % 8 == 0
    nB = B // Bblk
    BS = Bblk * S
    # TODO(synk): on v7x (2 TensorCores) prefer keeping B // batch_block >= 2
    # so the "parallel" grid axis can feed both cores.

    # Flatten (batch, seq) into the matmul M dimension / output rows.
    x_flat = src_seq.reshape(B * S, D)

    # Positional table tiled per batch block (the layer-0 add is in-kernel).
    pos = jnp.tile(pos_table[:S, :], (Bblk, 1))                   # (Bblk*S, D)

    # Additive key-padding bias, hoisted out of the layer loop and pre-laid-out
    # in the (head, batch-in-block) order used inside the kernel.
    neg = jnp.where(src_mask == 0.0, -1e9, 0.0).astype(jnp.float32)  # (B,1,S)
    neg = jnp.broadcast_to(neg.reshape(nB, 1, Bblk, S), (nB, H, Bblk, S))
    bias = neg.reshape(nB, H * Bblk, 1, S)

    vmem_limit = _vmem_limit_bytes(Bblk, S, D, d_inner, H, d_k, d_v)

    def wspec(shape):
        nd = len(shape)
        return pl.BlockSpec((1,) + tuple(shape),
                            lambda b, l, _nd=nd: (l,) + (0,) * _nd)

    kern = functools.partial(fused_encoder_kernel, n_head=H, d_k=d_k,
                             d_v=d_v, batch_block=Bblk)

    in_specs = [
        pl.BlockSpec((BS, D), lambda b, l: (b, 0)),                  # x (flat)
        pl.BlockSpec((1, H * Bblk, 1, S), lambda b, l: (b, 0, 0, 0)),  # bias
        pl.BlockSpec((BS, D), lambda b, l: (0, 0)),                  # pos (tiled)
        wspec((H, D, Kh)),                                           # fused QKV
        wspec((H, d_v, D)),                                          # out proj
        wspec((D, d_inner)),                                         # FFN w1
        wspec((1, d_inner)),                                         # FFN b1
        wspec((d_inner, D)),                                         # FFN w2
        wspec((8, D)),                                               # packed vecs
    ]

    enc_flat = pl.pallas_call(
        kern,
        out_shape=jax.ShapeDtypeStruct((B * S, D), jnp.float32),
        grid_spec=pltpu.PrefetchScalarGridSpec(
            num_scalar_prefetch=0,
            grid=(nB, n_layers),              # layer axis innermost (carry)
            in_specs=in_specs,
            out_specs=pl.BlockSpec((BS, D), lambda b, l: (b, 0)),
            scratch_shapes=[pltpu.VMEM((BS, D), jnp.float32)],  # activation carry
        ),
        compiler_params=pltpu.CompilerParams(
            dimension_semantics=("parallel", "arbitrary"),
            vmem_limit_bytes=vmem_limit),
    )(x_flat, bias, pos,
      stacked["wqkv"], stacked["wo"], stacked["w1"], stacked["b1"],
      stacked["w2"], stacked["vecs"])
    return (enc_flat.reshape(B, S, D),)


# ----------------------------------------------------------------------------
# Pure-JAX f32 reference (for a loose sanity check; kernel uses bf16 matmuls)
# ----------------------------------------------------------------------------
def encoder_reference(src_seq, src_mask, layer_params, pos_table, *,
                      n_head, d_k, d_v):
    B, S, D = src_seq.shape
    x = src_seq + pos_table[:S][None]
    mask4 = src_mask[:, None, :, :]  # (B,1,1,S)
    for p in layer_params:
        q = (x @ p["wq"]).reshape(B, S, n_head, d_k).transpose(0, 2, 1, 3)
        k = (x @ p["wk"]).reshape(B, S, n_head, d_k).transpose(0, 2, 1, 3)
        v = (x @ p["wv"]).reshape(B, S, n_head, d_v).transpose(0, 2, 1, 3)
        attn = (q @ k.transpose(0, 1, 3, 2)) / (d_k ** 0.5)
        attn = jnp.where(mask4 == 0, -1e9, attn)
        attn = jax.nn.softmax(attn, axis=-1)
        ctx = (attn @ v).transpose(0, 2, 1, 3).reshape(B, S, n_head * d_v)
        h1 = _layer_norm(ctx @ p["wo"] + x, p["ln1_g"], p["ln1_b"])
        f = jnp.maximum(h1 @ p["w1"] + p["b1"], 0.0)
        f = f @ p["w2"] + p["b2"]
        x = _layer_norm(f + h1, p["ln2_g"], p["ln2_b"])
    return x


# ----------------------------------------------------------------------------
if __name__ == "__main__":
    # small config consistent with Encoder.__init__
    B, S = 2, 8
    d_word_vec = d_model = 32
    n_layers = 2
    n_head = 2
    d_k = d_v = 16
    d_inner = 64
    n_position = 60

    key = jax.random.PRNGKey(0)
    k_x, k_p = jax.random.split(key)

    src_seq = jax.random.normal(k_x, (B, S, d_model), jnp.float32)
    # padding mask: last two positions of batch element 1 are padded
    mask_np = np.ones((B, 1, S), np.float32)
    mask_np[1, 0, 6:] = 0.0
    src_mask = jnp.asarray(mask_np)

    pos_table = sinusoid_encoding_table(n_position, d_word_vec)
    layer_params = init_encoder_params(
        k_p, n_layers=n_layers, n_head=n_head, d_k=d_k, d_v=d_v,
        d_model=d_model, d_inner=d_inner)
    stacked = stack_layer_params(layer_params, n_head=n_head, d_k=d_k, d_v=d_v)

    (enc_out,) = encoder_forward(src_seq, src_mask, stacked, pos_table,
                                 n_layers=n_layers, n_head=n_head,
                                 d_k=d_k, d_v=d_v)
    enc_out = jax.block_until_ready(enc_out)

    assert enc_out.shape == (B, S, d_model)
    assert bool(jnp.all(jnp.isfinite(enc_out)))

    # loose sanity check vs f32 reference (kernel uses bf16 MXU operands and
    # an approximate softmax reciprocal)
    ref = encoder_reference(src_seq, src_mask, layer_params, pos_table,
                            n_head=n_head, d_k=d_k, d_v=d_v)
    np.testing.assert_allclose(np.asarray(enc_out), np.asarray(ref),
                               atol=0.3, rtol=0.1)

    print("KERNEL_OK")
</pallas_src>

<mosaic_0001>
module attributes {stable_mosaic.version = 11 : i64} {
  func.func @fused_encoder_kernel(%arg0: i32, %arg1: i32, %arg2: memref<16x32xf32, #tpu.memory_space<vmem>>, %arg3: memref<1x4x1x8xf32, #tpu.memory_space<vmem>>, %arg4: memref<16x32xf32, #tpu.memory_space<vmem>>, %arg5: memref<1x2x32x48xbf16, #tpu.memory_space<vmem>>, %arg6: memref<1x2x16x32xbf16, #tpu.memory_space<vmem>>, %arg7: memref<1x32x64xbf16, #tpu.memory_space<vmem>>, %arg8: memref<1x1x64xf32, #tpu.memory_space<vmem>>, %arg9: memref<1x64x32xbf16, #tpu.memory_space<vmem>>, %arg10: memref<1x8x32xf32, #tpu.memory_space<vmem>>, %arg11: memref<16x32xf32, #tpu.memory_space<vmem>>, %arg12: memref<16x32xf32, #tpu.memory_space<vmem>>) attributes {dimension_semantics = [#tpu.dimension_semantics<parallel>, #tpu.dimension_semantics<arbitrary>], iteration_bounds = array<i64: 1, 2>, scalar_prefetch = 0 : i64, scratch_operands = 1 : i64, tpu.core_type = #tpu.core_type<tc>, window_params = [{transform_indices = @transform_0, window_bounds = array<i64: 16, 32>}, {transform_indices = @transform_1, window_bounds = array<i64: 1, 4, 1, 8>}, {pipeline_mode = #tpu.pipeline_mode<synchronous>, transform_indices = @transform_2, window_bounds = array<i64: 16, 32>}, {transform_indices = @transform_3, window_bounds = array<i64: 1, 2, 32, 48>}, {transform_indices = @transform_4, window_bounds = array<i64: 1, 2, 16, 32>}, {transform_indices = @transform_5, window_bounds = array<i64: 1, 32, 64>}, {transform_indices = @transform_6, window_bounds = array<i64: 1, 1, 64>}, {transform_indices = @transform_7, window_bounds = array<i64: 1, 64, 32>}, {transform_indices = @transform_8, window_bounds = array<i64: 1, 8, 32>}, {transform_indices = @transform_9, window_bounds = array<i64: 16, 32>}]} {
    %c0_i32 = arith.constant 0 : i32
    %0 = arith.cmpi eq, %arg1, %c0_i32 : i32
    %1 = arith.extui %0 : i1 to i32
    %c0_i32_0 = arith.constant 0 : i32
    %2 = arith.cmpi ne, %1, %c0_i32_0 : i32
    scf.if %2 {
      %c0_49 = arith.constant 0 : index
      %c0_50 = arith.constant 0 : index
      %118 = vector.load %arg2[%c0_49, %c0_50] : memref<16x32xf32, #tpu.memory_space<vmem>>, vector<16x32xf32>
      %c0_51 = arith.constant 0 : index
      %c0_52 = arith.constant 0 : index
      %119 = vector.load %arg4[%c0_51, %c0_52] : memref<16x32xf32, #tpu.memory_space<vmem>>, vector<16x32xf32>
      %120 = arith.addf %118, %119 : vector<16x32xf32>
      %c0_53 = arith.constant 0 : index
      %c0_54 = arith.constant 0 : index
      %121 = vector.load %arg12[%c0_53, %c0_54] : memref<16x32xf32, #tpu.memory_space<vmem>>, vector<16x32xf32>
      tpu.vector_store %arg12[%c0_53, %c0_54], %120 {strides = array<i32>} : memref<16x32xf32, #tpu.memory_space<vmem>>, vector<16x32xf32>,
    } else {
    }
    %c0 = arith.constant 0 : index
    %c0_1 = arith.constant 0 : index
    %3 = vector.load %arg12[%c0, %c0_1] : memref<16x32xf32, #tpu.memory_space<vmem>>, vector<16x32xf32>
    %4 = arith.truncf %3 : vector<16x32xf32> to vector<16x32xbf16>
    %5 = vector.shape_cast %4 : vector<16x32xbf16> to vector<1x16x32xbf16>
    %6 = vector.shape_cast %5 : vector<1x16x32xbf16> to vector<1x16x32xbf16>
    %7 = vector.broadcast %6 : vector<1x16x32xbf16> to vector<2x16x32xbf16>
    %c0_2 = arith.constant 0 : index
    %c0_3 = arith.constant 0 : index
    %c0_4 = arith.constant 0 : index
    %c0_5 = arith.constant 0 : index
    %8 = vector.load %arg5[%c0_2, %c0_3, %c0_4, %c0_5] : memref<1x2x32x48xbf16, #tpu.memory_space<vmem>>, vector<1x2x32x48xbf16>
    %9 = vector.shape_cast %8 : vector<1x2x32x48xbf16> to vector<2x32x48xbf16>
    "tpu.trace_start"() <{level = 10 : i32, message = "hmd,hdk->hmk"}> : () -> ()
    %cst = arith.constant dense<0.000000e+00> : vector<2x16x48xf32>
    %10 = tpu.matmul %7, %9, %cst {dimension_numbers = #tpu.dot_dimension_numbers<[2], [1], [1], [2], [0, 0, 0, 1, 1, 2], [0], [0]>} : vector<2x16x32xbf16>, vector<2x32x48xbf16>, vector<2x16x48xf32> -> vector<2x16x48xf32>
    "tpu.trace_stop"() : () -> ()
    %11 = vector.extract_strided_slice %10 {offsets = [0, 0, 0], sizes = [2, 16, 16], strides = [1, 1, 1]} : vector<2x16x48xf32> to vector<2x16x16xf32>
    %12 = arith.truncf %11 : vector<2x16x16xf32> to vector<2x16x16xbf16>
    %13 = vector.shape_cast %12 : vector<2x16x16xbf16> to vector<4x8x16xbf16>
    %14 = vector.extract_strided_slice %10 {offsets = [0, 0, 16], sizes = [2, 16, 16], strides = [1, 1, 1]} : vector<2x16x48xf32> to vector<2x16x16xf32>
    %15 = arith.truncf %14 : vector<2x16x16xf32> to vector<2x16x16xbf16>
    %16 = vector.shape_cast %15 : vector<2x16x16xbf16> to vector<4x8x16xbf16>
    %17 = vector.extract_strided_slice %10 {offsets = [0, 0, 32], sizes = [2, 16, 16], strides = [1, 1, 1]} : vector<2x16x48xf32> to vector<2x16x16xf32>
    %18 = arith.truncf %17 : vector<2x16x16xf32> to vector<2x16x16xbf16>
    %19 = vector.shape_cast %18 : vector<2x16x16xbf16> to vector<4x8x16xbf16>
    "tpu.trace_start"() <{level = 10 : i32, message = "bqd,bkd->bqk"}> : () -> ()
    %cst_6 = arith.constant dense<0.000000e+00> : vector<4x8x8xf32>
    %20 = tpu.matmul %13, %16, %cst_6 {dimension_numbers = #tpu.dot_dimension_numbers<[2], [2], [1], [1], [0, 0, 0, 1, 1, 1], [0], [0]>} : vector<4x8x16xbf16>, vector<4x8x16xbf16>, vector<4x8x8xf32> -> vector<4x8x8xf32>
    "tpu.trace_stop"() : () -> ()
    %cst_7 = arith.constant 2.500000e-01 : f32
    %21 = vector.broadcast %cst_7 : f32 to vector<4x8x8xf32>
    %22 = arith.mulf %20, %21 : vector<4x8x8xf32>
    %c0_8 = arith.constant 0 : index
    %c0_9 = arith.constant 0 : index
    %c0_10 = arith.constant 0 : index
    %c0_11 = arith.constant 0 : index
    %23 = vector.load %arg3[%c0_8, %c0_9, %c0_10, %c0_11] : memref<1x4x1x8xf32, #tpu.memory_space<vmem>>, vector<1x4x1x8xf32>
    %24 = vector.shape_cast %23 : vector<1x4x1x8xf32> to vector<4x1x8xf32>
    %25 = vector.broadcast %24 : vector<4x1x8xf32> to vector<4x8x8xf32>
    %26 = arith.addf %22, %25 : vector<4x8x8xf32>
    %cst_12 = arith.constant dense<0xFF800000> : vector<4x8xf32>
    %27 = vector.multi_reduction <maximumf>, %26, %cst_12 [2] : vector<4x8x8xf32> to vector<4x8xf32>
    %28 = vector.shape_cast %27 : vector<4x8xf32> to vector<4x8x1xf32>
    %29 = vector.broadcast %28 : vector<4x8x1xf32> to vector<4x8x8xf32>
    %30 = arith.subf %26, %29 : vector<4x8x8xf32>
    %31 = math.exp %30 : vector<4x8x8xf32>
    %cst_13 = arith.constant dense<0.000000e+00> : vector<4x8xf32>
    %32 = vector.multi_reduction <add>, %31, %cst_13 [2] : vector<4x8x8xf32> to vector<4x8xf32>
    %33 = vector.shape_cast %32 : vector<4x8xf32> to vector<4x8x1xf32>
    %34 = tpu.reciprocal %33 {approx = true} : vector<4x8x1xf32> -> vector<4x8x1xf32>
    %35 = vector.broadcast %34 : vector<4x8x1xf32> to vector<4x8x8xf32>
    %36 = arith.mulf %31, %35 : vector<4x8x8xf32>
    %37 = arith.truncf %36 : vector<4x8x8xf32> to vector<4x8x8xbf16>
    "tpu.trace_start"() <{level = 10 : i32, message = "bqk,bkd->bqd"}> : () -> ()
    %cst_14 = arith.constant dense<0.000000e+00> : vector<4x8x16xf32>
    %38 = tpu.matmul %37, %19, %cst_14 {dimension_numbers = #tpu.dot_dimension_numbers<[2], [1], [1], [2], [0, 0, 0, 1, 1, 2], [0], [0]>} : vector<4x8x8xbf16>, vector<4x8x16xbf16>, vector<4x8x16xf32> -> vector<4x8x16xf32>
    "tpu.trace_stop"() : () -> ()
    %39 = vector.shape_cast %38 : vector<4x8x16xf32> to vector<2x16x16xf32>
    %40 = arith.truncf %39 : vector<2x16x16xf32> to vector<2x16x16xbf16>
    %c0_15 = arith.constant 0 : index
    %c0_16 = arith.constant 0 : index
    %c0_17 = arith.constant 0 : index
    %c0_18 = arith.constant 0 : index
    %41 = vector.load %arg6[%c0_15, %c0_16, %c0_17, %c0_18] : memref<1x2x16x32xbf16, #tpu.memory_space<vmem>>, vector<1x2x16x32xbf16>
    %42 = vector.shape_cast %41 : vector<1x2x16x32xbf16> to vector<2x16x32xbf16>
    "tpu.trace_start"() <{level = 10 : i32, message = "hmd,hdn->hmn"}> : () -> ()
    %cst_19 = arith.constant dense<0.000000e+00> : vector<2x16x32xf32>
    %43 = tpu.matmul %40, %42, %cst_19 {dimension_numbers = #tpu.dot_dimension_numbers<[2], [1], [1], [2], [0, 0, 0, 1, 1, 2], [0], [0]>} : vector<2x16x16xbf16>, vector<2x16x32xbf16>, vector<2x16x32xf32> -> vector<2x16x32xf32>
    "tpu.trace_stop"() : () -> ()
    %cst_20 = arith.constant dense<0.000000e+00> : vector<16x32xf32>
    %44 = vector.multi_reduction <add>, %43, %cst_20 [0] : vector<2x16x32xf32> to vector<16x32xf32>
    %c0_21 = arith.constant 0 : index
    %c0_22 = arith.constant 0 : index
    %c0_23 = arith.constant 0 : index
    %45 = vector.load %arg10[%c0_21, %c0_22, %c0_23] : memref<1x8x32xf32, #tpu.memory_space<vmem>>, vector<1x8x32xf32>
    %46 = vector.shape_cast %45 : vector<1x8x32xf32> to vector<8x32xf32>
    %47 = arith.addf %44, %3 : vector<16x32xf32>
    %48 = vector.extract_strided_slice %46 {offsets = [0, 0], sizes = [1, 32], strides = [1, 1]} : vector<8x32xf32> to vector<1x32xf32>
    %49 = vector.extract_strided_slice %46 {offsets = [1, 0], sizes = [1, 32], strides = [1, 1]} : vector<8x32xf32> to vector<1x32xf32>
    %cst_24 = arith.constant dense<0.000000e+00> : vector<16xf32>
    %50 = vector.multi_reduction <add>, %47, %cst_24 [1] : vector<16x32xf32> to vector<16xf32>
    %51 = vector.shape_cast %50 : vector<16xf32> to vector<16x1xf32>
    %cst_25 = arith.constant 3.200000e+01 : f32
    %52 = vector.broadcast %cst_25 : f32 to vector<16x1xf32>
    %53 = arith.divf %51, %52 : vector<16x1xf32>
    %54 = vector.broadcast %53 : vector<16x1xf32> to vector<16x32xf32>
    %55 = arith.subf %47, %54 : vector<16x32xf32>
    %56 = arith.mulf %55, %55 : vector<16x32xf32>
    %cst_26 = arith.constant dense<0.000000e+00> : vector<16xf32>
    %57 = vector.multi_reduction <add>, %56, %cst_26 [1] : vector<16x32xf32> to vector<16xf32>
    %58 = vector.shape_cast %57 : vector<16xf32> to vector<16x1xf32>
    %cst_27 = arith.constant 3.200000e+01 : f32
    %59 = vector.broadcast %cst_27 : f32 to vector<16x1xf32>
    %60 = arith.divf %58, %59 : vector<16x1xf32>
    %cst_28 = arith.constant 9.99999997E-7 : f32
    %61 = vector.broadcast %cst_28 : f32 to vector<16x1xf32>
    %62 = arith.addf %60, %61 : vector<16x1xf32>
    %63 = math.rsqrt %62 : vector<16x1xf32>
    %64 = vector.broadcast %53 : vector<16x1xf32> to vector<16x32xf32>
    %65 = arith.subf %47, %64 : vector<16x32xf32>
    %66 = vector.broadcast %63 : vector<16x1xf32> to vector<16x32xf32>
    %67 = arith.mulf %65, %66 : vector<16x32xf32>
    %68 = vector.broadcast %48 : vector<1x32xf32> to vector<16x32xf32>
    %69 = arith.mulf %67, %68 : vector<16x32xf32>
    %70 = vector.broadcast %49 : vector<1x32xf32> to vector<16x32xf32>
    %71 = arith.addf %69, %70 : vector<16x32xf32>
    %72 = arith.truncf %71 : vector<16x32xf32> to vector<16x32xbf16>
    %c0_29 = arith.constant 0 : index
    %c0_30 = arith.constant 0 : index
    %c0_31 = arith.constant 0 : index
    %73 = vector.load %arg7[%c0_29, %c0_30, %c0_31] : memref<1x32x64xbf16, #tpu.memory_space<vmem>>, vector<1x32x64xbf16>
    %74 = vector.shape_cast %73 : vector<1x32x64xbf16> to vector<32x64xbf16>
    %cst_32 = arith.constant dense<0.000000e+00> : vector<16x64xf32>
    %75 = tpu.matmul %72, %74, %cst_32 {dimension_numbers = #tpu.dot_dimension_numbers<[1], [0], [0], [1], [0, 0, 1, 1], [], []>} : vector<16x32xbf16>, vector<32x64xbf16>, vector<16x64xf32> -> vector<16x64xf32>
    %c0_33 = arith.constant 0 : index
    %c0_34 = arith.constant 0 : index
    %c0_35 = arith.constant 0 : index
    %76 = vector.load %arg8[%c0_33, %c0_34, %c0_35] : memref<1x1x64xf32, #tpu.memory_space<vmem>>, vector<1x1x64xf32>
    %77 = vector.shape_cast %76 : vector<1x1x64xf32> to vector<1x64xf32>
    %78 = vector.broadcast %77 : vector<1x64xf32> to vector<16x64xf32>
    %79 = arith.addf %75, %78 : vector<16x64xf32>
    %cst_36 = arith.constant 0.000000e+00 : f32
    %80 = vector.broadcast %cst_36 : f32 to vector<16x64xf32>
    %81 = arith.maximumf %79, %80 : vector<16x64xf32>
    %82 = arith.truncf %81 : vector<16x64xf32> to vector<16x64xbf16>
    %c0_37 = arith.constant 0 : index
    %c0_38 = arith.constant 0 : index
    %c0_39 = arith.constant 0 : index
    %83 = vector.load %arg9[%c0_37, %c0_38, %c0_39] : memref<1x64x32xbf16, #tpu.memory_space<vmem>>, vector<1x64x32xbf16>
    %84 = vector.shape_cast %83 : vector<1x64x32xbf16> to vector<64x32xbf16>
    %cst_40 = arith.constant dense<0.000000e+00> : vector<16x32xf32>
    %85 = tpu.matmul %82, %84, %cst_40 {dimension_numbers = #tpu.dot_dimension_numbers<[1], [0], [0], [1], [0, 0, 1, 1], [], []>} : vector<16x64xbf16>, vector<64x32xbf16>, vector<16x32xf32> -> vector<16x32xf32>
    %86 = vector.extract_strided_slice %46 {offsets = [4, 0], sizes = [1, 32], strides = [1, 1]} : vector<8x32xf32> to vector<1x32xf32>
    %87 = vector.broadcast %86 : vector<1x32xf32> to vector<16x32xf32>
    %88 = arith.addf %85, %87 : vector<16x32xf32>
    %89 = arith.addf %88, %71 : vector<16x32xf32>
    %90 = vector.extract_strided_slice %46 {offsets = [2, 0], sizes = [1, 32], strides = [1, 1]} : vector<8x32xf32> to vector<1x32xf32>
    %91 = vector.extract_strided_slice %46 {offsets = [3, 0], sizes = [1, 32], strides = [1, 1]} : vector<8x32xf32> to vector<1x32xf32>
    %cst_41 = arith.constant dense<0.000000e+00> : vector<16xf32>
    %92 = vector.multi_reduction <add>, %89, %cst_41 [1] : vector<16x32xf32> to vector<16xf32>
    %93 = vector.shape_cast %92 : vector<16xf32> to vector<16x1xf32>
    %cst_42 = arith.constant 3.200000e+01 : f32
    %94 = vector.broadcast %cst_42 : f32 to vector<16x1xf32>
    %95 = arith.divf %93, %94 : vector<16x1xf32>
    %96 = vector.broadcast %95 : vector<16x1xf32> to vector<16x32xf32>
    %97 = arith.subf %89, %96 : vector<16x32xf32>
    %98 = arith.mulf %97, %97 : vector<16x32xf32>
    %cst_43 = arith.constant dense<0.000000e+00> : vector<16xf32>
    %99 = vector.multi_reduction <add>, %98, %cst_43 [1] : vector<16x32xf32> to vector<16xf32>
    %100 = vector.shape_cast %99 : vector<16xf32> to vector<16x1xf32>
    %cst_44 = arith.constant 3.200000e+01 : f32
    %101 = vector.broadcast %cst_44 : f32 to vector<16x1xf32>
    %102 = arith.divf %100, %101 : vector<16x1xf32>
    %cst_45 = arith.constant 9.99999997E-7 : f32
    %103 = vector.broadcast %cst_45 : f32 to vector<16x1xf32>
    %104 = arith.addf %102, %103 : vector<16x1xf32>
    %105 = math.rsqrt %104 : vector<16x1xf32>
    %106 = vector.broadcast %95 : vector<16x1xf32> to vector<16x32xf32>
    %107 = arith.subf %89, %106 : vector<16x32xf32>
    %108 = vector.broadcast %105 : vector<16x1xf32> to vector<16x32xf32>
    %109 = arith.mulf %107, %108 : vector<16x32xf32>
    %110 = vector.broadcast %90 : vector<1x32xf32> to vector<16x32xf32>
    %111 = arith.mulf %109, %110 : vector<16x32xf32>
    %112 = vector.broadcast %91 : vector<1x32xf32> to vector<16x32xf32>
    %113 = arith.addf %111, %112 : vector<16x32xf32>
    %c0_46 = arith.constant 0 : index
    %c0_47 = arith.constant 0 : index
    %114 = vector.load %arg12[%c0_46, %c0_47] : memref<16x32xf32, #tpu.memory_space<vmem>>, vector<16x32xf32>
    tpu.vector_store %arg12[%c0_46, %c0_47], %113 {strides = array<i32>} : memref<16x32xf32, #tpu.memory_space<vmem>>, vector<16x32xf32>,
    %c1_i32 = arith.constant 1 : i32
    %115 = arith.cmpi eq, %arg1, %c1_i32 : i32
    %116 = arith.extui %115 : i1 to i32
    %c0_i32_48 = arith.constant 0 : i32
    %117 = arith.cmpi ne, %116, %c0_i32_48 : i32
    scf.if %117 {
      %c0_49 = arith.constant 0 : index
      %c0_50 = arith.constant 0 : index
      %118 = vector.load %arg11[%c0_49, %c0_50] : memref<16x32xf32, #tpu.memory_space<vmem>>, vector<16x32xf32>
      tpu.vector_store %arg11[%c0_49, %c0_50], %113 {strides = array<i32>} : memref<16x32xf32, #tpu.memory_space<vmem>>, vector<16x32xf32>,
    } else {
    }
    return
  }
  func.func @transform_0(%arg0: i32, %arg1: i32) -> (i32, i32) {
    %c0_i32 = arith.constant 0 : i32
    %c0_i32_0 = arith.constant 0 : i32
    return %arg0, %c0_i32 : i32, i32
  }
  func.func @transform_1(%arg0: i32, %arg1: i32) -> (i32, i32, i32, i32) {
    %c0_i32 = arith.constant 0 : i32
    %c0_i32_0 = arith.constant 0 : i32
    %c0_i32_1 = arith.constant 0 : i32
    %c0_i32_2 = arith.constant 0 : i32
    return %arg0, %c0_i32, %c0_i32_0, %c0_i32_1 : i32, i32, i32, i32
  }
  func.func @transform_2(%arg0: i32, %arg1: i32) -> (i32, i32) {
    %c0_i32 = arith.constant 0 : i32
    %c0_i32_0 = arith.constant 0 : i32
    %c0_i32_1 = arith.constant 0 : i32
    return %c0_i32, %c0_i32_0 : i32, i32
  }
  func.func @transform_3(%arg0: i32, %arg1: i32) -> (i32, i32, i32, i32) {
    %c0_i32 = arith.constant 0 : i32
    %c0_i32_0 = arith.constant 0 : i32
    %c0_i32_1 = arith.constant 0 : i32
    %c0_i32_2 = arith.constant 0 : i32
    return %arg1, %c0_i32, %c0_i32_0, %c0_i32_1 : i32, i32, i32, i32
  }
  func.func @transform_4(%arg0: i32, %arg1: i32) -> (i32, i32, i32, i32) {
    %c0_i32 = arith.constant 0 : i32
    %c0_i32_0 = arith.constant 0 : i32
    %c0_i32_1 = arith.constant 0 : i32
    %c0_i32_2 = arith.constant 0 : i32
    return %arg1, %c0_i32, %c0_i32_0, %c0_i32_1 : i32, i32, i32, i32
  }
  func.func @transform_5(%arg0: i32, %arg1: i32) -> (i32, i32, i32) {
    %c0_i32 = arith.constant 0 : i32
    %c0_i32_0 = arith.constant 0 : i32
    %c0_i32_1 = arith.constant 0 : i32
    return %arg1, %c0_i32, %c0_i32_0 : i32, i32, i32
  }
  func.func @transform_6(%arg0: i32, %arg1: i32) -> (i32, i32, i32) {
    %c0_i32 = arith.constant 0 : i32
    %c0_i32_0 = arith.constant 0 : i32
    %c0_i32_1 = arith.constant 0 : i32
    return %arg1, %c0_i32, %c0_i32_0 : i32, i32, i32
  }
  func.func @transform_7(%arg0: i32, %arg1: i32) -> (i32, i32, i32) {
    %c0_i32 = arith.constant 0 : i32
    %c0_i32_0 = arith.constant 0 : i32
    %c0_i32_1 = arith.constant 0 : i32
    return %arg1, %c0_i32, %c0_i32_0 : i32, i32, i32
  }
  func.func @transform_8(%arg0: i32, %arg1: i32) -> (i32, i32, i32) {
    %c0_i32 = arith.constant 0 : i32
    %c0_i32_0 = arith.constant 0 : i32
    %c0_i32_1 = arith.constant 0 : i32
    return %arg1, %c0_i32, %c0_i32_0 : i32, i32, i32
  }
  func.func @transform_9(%arg0: i32, %arg1: i32) -> (i32, i32) {
    %c0_i32 = arith.constant 0 : i32
    %c0_i32_0 = arith.constant 0 : i32
    return %arg0, %c0_i32 : i32, i32
  }
}

</mosaic_0001>

<llo_original>
// kernel: tpu_custom_call.1
$region0: #{tpu_custom_call.1}
  #allocation0 [shape = 'u32[]', space=smem, size = 0x4, offset = 0x4, fixed_abs, tag = 'smem constant byte address 0x4 - core index']
  #allocation1 [shape = 'u32[72,128]{1,0:T(1,128)}', space=vmem, size = 0x9000, scoped, tag = 'internal scratch']
  #allocation2 [shape = 'f32[16,32]{1,0:T(8,128)}', space=vmem, size = 0x2000, scoped, tag = 'scratch operand']
  %s0 = inlined_call_operand.hbm [shape: f32[16,32], index: 0, kind: input, shape index: {}]
  %s1 = inlined_call_operand.hbm [shape: f32[1,4,1,8], index: 1, kind: input, shape index: {}]
  %s2 = inlined_call_operand.hbm [shape: f32[16,32], index: 2, kind: input, shape index: {}]
  %s3 = inlined_call_operand.vmem [shape: bf16[2,2,32,48], index: 3, kind: input, shape index: {}]
  %s4 = inlined_call_operand.vmem [shape: bf16[2,2,16,32], index: 4, kind: input, shape index: {}]
  %s5 = inlined_call_operand.hbm [shape: bf16[2,32,64], index: 5, kind: input, shape index: {}]
  %s6 = inlined_call_operand.vmem [shape: f32[2,1,64], index: 6, kind: input, shape index: {}]
  %s7 = inlined_call_operand.vmem [shape: bf16[2,64,32], index: 7, kind: input, shape index: {}]
  %s8 = inlined_call_operand.hbm [shape: f32[2,8,32], index: 8, kind: input, shape index: {}]
  %s9 = inlined_call_operand.hbm [shape: f32[16,32], index: 9, kind: output, shape index: {}]
  %s10 = sld [smem:[#allocation0]]
  $region97: #{tpu_custom_call.1} parent=0
    _
  %s12 = ssub.s32 1, %s10
  %s13 = scalar_select 0, %s12, %s10
  $region1: #{tpu_custom_call.1} parent=0
    #allocation3 [shape = 'u8[8192]{0}', space=vmem, size = 0x2000, scoped, tag = 'input window, operand 0, single buffered']
    #allocation4 [shape = 's32[2]{0}', space=sflag, size = 0x8, scoped, tag = 'scoped memory for tpu_custom_call.1']
    #allocation5 [shape = 's32[2]{0}', space=sflag, size = 0x8, scoped, tag = 'scoped memory for tpu_custom_call.1']
    #allocation6 [shape = 'u8[2048]{0}', space=vmem, size = 0x800, scoped, tag = 'input window, operand 1, single buffered']
    #allocation7 [shape = 's32[1]{0}', space=sflag, size = 0x4, scoped, tag = 'scoped memory for tpu_custom_call.1']
    #allocation8 [shape = 'u8[8192]{0}', space=vmem, size = 0x2000, scoped, tag = 'input window, operand 2, single buffered']
    #allocation9 [shape = 'u8[16384]{0}', space=vmem, size = 0x4000, scoped, tag = 'input window, operand 5']
    #allocation10 [shape = 's32[2]{0}', space=sflag, size = 0x8, scoped, tag = 'scoped memory for tpu_custom_call.1']
    #allocation11 [shape = 'u8[8192]{0}', space=vmem, size = 0x2000, scoped, tag = 'input window, operand 8']
    #allocation12 [shape = 'u8[8192]{0}', space=vmem, size = 0x2000, scoped, tag = 'output window, operand 0, single buffered']
    %14 = vsyncpa [#allocation4], 0
    %15 = vsyncpa [#allocation7], 0
    %16 = vsyncpa [#allocation10], 0
    %s17 = scalar_lea.sflag [#allocation10], 1
    %18 = vsyncpa %s17, 0
    %19 = vsyncpa [#allocation5], 0
    loop: start=0, step=1, limit=4
    $region2: #{tpu_custom_call.1} parent=1 // loop_pre_header
      _
    $region3: #{tpu_custom_call.1} parent=1 // loop_header
      %s21 = sphi 0, %s25
      %p22 = scmp.ge.s32.totalorder %s21, 4
      %s28 = sphi 0, %s40
      %s29 = sphi 0, %s36
      %s30 = sphi 0, %s28
      %s31 = sphi 0, %s29
      %s32 = sphi 0, %s30
      %s33 = sphi 0, %s31
      %s43 = sphi 0, %s45
      %s46 = sphi 0, %s43
      %s47 = sphi 0, %s46
      %s63 = sphi 0, %s47
      %s69 = sphi 0, %s71
      %s72 = sphi 0, %s69
      %s73 = sphi 0, %s72
      %s89 = sphi 0, %s73
      %s93 = sphi 0, %s93
      %s95 = sphi 0, %s93
      %s96 = sphi 0, %s95
      %s110 = sphi 0, %s96
      %s116 = sphi 0, %s118
      %s119 = sphi 0, %s116
      %s120 = sphi 0, %s119
      %s136 = sphi 0, %s120
      %s142 = sphi 0, %s144
      %s145 = sphi 0, %s142
      %s146 = sphi 0, %s145
      %s162 = sphi 0, %s146
      %s168 = sphi 0, %s170
      %s171 = sphi 0, %s168
      %s172 = sphi 0, %s171
      %s188 = sphi 0, %s172
      %s194 = sphi 0, %s196
      %s197 = sphi 0, %s194
      %s198 = sphi 0, %s197
      %s214 = sphi 0, %s198
      %s220 = sphi 0, %s222
      %s223 = sphi 0, %s220
      %s224 = sphi 0, %s223
      %s240 = sphi 0, %s224
      %s246 = sphi 0, %s248
      %s249 = sphi 0, %s246
      %s250 = sphi 0, %s249
      %s266 = sphi 0, %s250
      %s272 = sphi 0, %s274
      %s275 = sphi 0, %s272
      %s276 = sphi 0, %s275
      %s292 = sphi 0, %s276
    $region4: #{tpu_custom_call.1} parent=1 // loop_header_branch
      %24 = sbr.rel (%p22) target = $region8
    $region5: #{tpu_custom_call.1} parent=1 // loop_body
      %s26 = ssub.s32 %s21, 1
      %s27 = ssub.s32 %s21, 2
      %s34 = sadd.s32 1, %s29
      %p35 = scmp.ge.s32.totalorder %s34, 2
      %s36 = scalar_select %p35, 0, %s34
      %s37 = sadd.s32 1, %s28
      %s38 = scalar_select %p35, %s37, %s28
      %p39 = scmp.ge.s32.totalorder %s38, 1
      %s40 = scalar_select %p39, 0, %s38
      %s41 = ssub.s32 %s28, %s40
      %p42 = scmp.eq.s32.totalorder %s41, 0
      %s44 = sadd.s32 %s43, 1
      %s45 = scalar_select %p42, %s43, %s44
      %p48 = pneg %p42
      %p49 = scmp.eq.s32.totalorder %s21, 1
      %p50 = por %p48, %p49
      %p51 = scmp.ne.s32.totalorder %s43, %s46
      %p52 = scmp.eq.s32.totalorder %s21, 0
      %p53 = por %p51, %p52
      %p54 = scmp.ne.s32.totalorder %s43, %s46
      %p55 = scmp.eq.s32.totalorder %s26, 1
      %p56 = por %p54, %p55
      %p57 = scmp.ne.s32.totalorder %s46, %s47
      %p58 = scmp.eq.s32.totalorder %s26, 0
      %p59 = por %p57, %p58
      %p60 = scmp.ne.s32.totalorder %s46, %s47
      %p61 = scmp.eq.s32.totalorder %s27, 1
      %p62 = por %p60, %p61
      %p64 = scmp.ne.s32.totalorder %s47, %s63
      %p65 = scmp.eq.s32.totalorder %s27, 0
      %p66 = por %p64, %p65
      %s67 = ssub.s32 %s28, %s40
      %p68 = scmp.eq.s32.totalorder %s67, 0
      %s70 = sadd.s32 %s69, 1
      %s71 = scalar_select %p68, %s69, %s70
      %p74 = pneg %p68
      %p75 = scmp.eq.s32.totalorder %s21, 1
      %p76 = por %p74, %p75
      %p77 = scmp.ne.s32.totalorder %s69, %s72
      %p78 = scmp.eq.s32.totalorder %s21, 0
      %p79 = por %p77, %p78
      %p80 = scmp.ne.s32.totalorder %s69, %s72
      %p81 = scmp.eq.s32.totalorder %s26, 1
      %p82 = por %p80, %p81
      %p83 = scmp.ne.s32.totalorder %s72, %s73
      %p84 = scmp.eq.s32.totalorder %s26, 0
      %p85 = por %p83, %p84
      %p86 = scmp.ne.s32.totalorder %s72, %s73
      %p87 = scmp.eq.s32.totalorder %s27, 1
      %p88 = por %p86, %p87
      %p90 = scmp.ne.s32.totalorder %s73, %s89
      %p91 = scmp.eq.s32.totalorder %s27, 0
      %p92 = por %p90, %p91
      %s94 = sadd.s32 %s93, 1
      %p97 = scmp.eq.s32.totalorder %s21, 1
      %p98 = scmp.ne.s32.totalorder %s93, %s95
      %p99 = scmp.eq.s32.totalorder %s21, 0
      %p100 = por %p98, %p99
      %p101 = scmp.ne.s32.totalorder %s93, %s95
      %p102 = scmp.eq.s32.totalorder %s26, 1
      %p103 = por %p101, %p102
      %p104 = scmp.ne.s32.totalorder %s95, %s96
      %p105 = scmp.eq.s32.totalorder %s26, 0
      %p106 = por %p104, %p105
      %p107 = scmp.ne.s32.totalorder %s95, %s96
      %p108 = scmp.eq.s32.totalorder %s27, 1
      %p109 = por %p107, %p108
      %p111 = scmp.ne.s32.totalorder %s96, %s110
      %p112 = scmp.eq.s32.totalorder %s27, 0
      %p113 = por %p111, %p112
      %s114 = ssub.s32 %s29, %s36
      %p115 = scmp.eq.s32.totalorder %s114, 0
      %s117 = sadd.s32 %s116, 1
      %s118 = scalar_select %p115, %s116, %s117
      %p121 = pneg %p115
      %p122 = scmp.eq.s32.totalorder %s21, 1
      %p123 = por %p121, %p122
      %p124 = scmp.ne.s32.totalorder %s116, %s119
      %p125 = scmp.eq.s32.totalorder %s21, 0
      %p126 = por %p124, %p125
      %p127 = scmp.ne.s32.totalorder %s116, %s119
      %p128 = scmp.eq.s32.totalorder %s26, 1
      %p129 = por %p127, %p128
      %p130 = scmp.ne.s32.totalorder %s119, %s120
      %p131 = scmp.eq.s32.totalorder %s26, 0
      %p132 = por %p130, %p131
      %p133 = scmp.ne.s32.totalorder %s119, %s120
      %p134 = scmp.eq.s32.totalorder %s27, 1
      %p135 = por %p133, %p134
      %p137 = scmp.ne.s32.totalorder %s120, %s136
      %p138 = scmp.eq.s32.totalorder %s27, 0
      %p139 = por %p137, %p138
      %s140 = ssub.s32 %s29, %s36
      %p141 = scmp.eq.s32.totalorder %s140, 0
      %s143 = sadd.s32 %s142, 1
      %s144 = scalar_select %p141, %s142, %s143
      %p147 = pneg %p141
      %p148 = scmp.eq.s32.totalorder %s21, 1
      %p149 = por %p147, %p148
      %p150 = scmp.ne.s32.totalorder %s142, %s145
      %p151 = scmp.eq.s32.totalorder %s21, 0
      %p152 = por %p150, %p151
      %p153 = scmp.ne.s32.totalorder %s142, %s145
      %p154 = scmp.eq.s32.totalorder %s26, 1
      %p155 = por %p153, %p154
      %p156 = scmp.ne.s32.totalorder %s145, %s146
      %p157 = scmp.eq.s32.totalorder %s26, 0
      %p158 = por %p156, %p157
      %p159 = scmp.ne.s32.totalorder %s145, %s146
      %p160 = scmp.eq.s32.totalorder %s27, 1
      %p161 = por %p159, %p160
      %p163 = scmp.ne.s32.totalorder %s146, %s162
      %p164 = scmp.eq.s32.totalorder %s27, 0
      %p165 = por %p163, %p164
      %s166 = ssub.s32 %s29, %s36
      %p167 = scmp.eq.s32.totalorder %s166, 0
      %s169 = sadd.s32 %s168, 1
      %s170 = scalar_select %p167, %s168, %s169
      %p173 = pneg %p167
      %p174 = scmp.eq.s32.totalorder %s21, 1
      %p175 = por %p173, %p174
      %p176 = scmp.ne.s32.totalorder %s168, %s171
      %p177 = scmp.eq.s32.totalorder %s21, 0
      %p178 = por %p176, %p177
      %p179 = scmp.ne.s32.totalorder %s168, %s171
      %p180 = scmp.eq.s32.totalorder %s26, 1
      %p181 = por %p179, %p180
      %p182 = scmp.ne.s32.totalorder %s171, %s172
      %p183 = scmp.eq.s32.totalorder %s26, 0
      %p184 = por %p182, %p183
      %p185 = scmp.ne.s32.totalorder %s171, %s172
      %p186 = scmp.eq.s32.totalorder %s27, 1
      %p187 = por %p185, %p186
      %p189 = scmp.ne.s32.totalorder %s172, %s188
      %p190 = scmp.eq.s32.totalorder %s27, 0
      %p191 = por %p189, %p190
      %s192 = ssub.s32 %s29, %s36
      %p193 = scmp.eq.s32.totalorder %s192, 0
      %s195 = sadd.s32 %s194, 1
      %s196 = scalar_select %p193, %s194, %s195
      %p199 = pneg %p193
      %p200 = scmp.eq.s32.totalorder %s21, 1
      %p201 = por %p199, %p200
      %p202 = scmp.ne.s32.totalorder %s194, %s197
      %p203 = scmp.eq.s32.totalorder %s21, 0
      %p204 = por %p202, %p203
      %p205 = scmp.ne.s32.totalorder %s194, %s197
      %p206 = scmp.eq.s32.totalorder %s26, 1
      %p207 = por %p205, %p206
      %p208 = scmp.ne.s32.totalorder %s197, %s198
      %p209 = scmp.eq.s32.totalorder %s26, 0
      %p210 = por %p208, %p209
      %p211 = scmp.ne.s32.totalorder %s197, %s198
      %p212 = scmp.eq.s32.totalorder %s27, 1
      %p213 = por %p211, %p212
      %p215 = scmp.ne.s32.totalorder %s198, %s214
      %p216 = scmp.eq.s32.totalorder %s27, 0
      %p217 = por %p215, %p216
      %s218 = ssub.s32 %s29, %s36
      %p219 = scmp.eq.s32.totalorder %s218, 0
      %s221 = sadd.s32 %s220, 1
      %s222 = scalar_select %p219, %s220, %s221
      %p225 = pneg %p219
      %p226 = scmp.eq.s32.totalorder %s21, 1
      %p227 = por %p225, %p226
      %p228 = scmp.ne.s32.totalorder %s220, %s223
      %p229 = scmp.eq.s32.totalorder %s21, 0
      %p230 = por %p228, %p229
      %p231 = scmp.ne.s32.totalorder %s220, %s223
      %p232 = scmp.eq.s32.totalorder %s26, 1
      %p233 = por %p231, %p232
      %p234 = scmp.ne.s32.totalorder %s223, %s224
      %p235 = scmp.eq.s32.totalorder %s26, 0
      %p236 = por %p234, %p235
      %p237 = scmp.ne.s32.totalorder %s223, %s224
      %p238 = scmp.eq.s32.totalorder %s27, 1
      %p239 = por %p237, %p238
      %p241 = scmp.ne.s32.totalorder %s224, %s240
      %p242 = scmp.eq.s32.totalorder %s27, 0
      %p243 = por %p241, %p242
      %s244 = ssub.s32 %s29, %s36
      %p245 = scmp.eq.s32.totalorder %s244, 0
      %s247 = sadd.s32 %s246, 1
      %s248 = scalar_select %p245, %s246, %s247
      %p251 = pneg %p245
      %p252 = scmp.eq.s32.totalorder %s21, 1
      %p253 = por %p251, %p252
      %p254 = scmp.ne.s32.totalorder %s246, %s249
      %p255 = scmp.eq.s32.totalorder %s21, 0
      %p256 = por %p254, %p255
      %p257 = scmp.ne.s32.totalorder %s246, %s249
      %p258 = scmp.eq.s32.totalorder %s26, 1
      %p259 = por %p257, %p258
      %p260 = scmp.ne.s32.totalorder %s249, %s250
      %p261 = scmp.eq.s32.totalorder %s26, 0
      %p262 = por %p260, %p261
      %p263 = scmp.ne.s32.totalorder %s249, %s250
      %p264 = scmp.eq.s32.totalorder %s27, 1
      %p265 = por %p263, %p264
      %p267 = scmp.ne.s32.totalorder %s250, %s266
      %p268 = scmp.eq.s32.totalorder %s27, 0
      %p269 = por %p267, %p268
      %s270 = ssub.s32 %s28, %s40
      %p271 = scmp.eq.s32.totalorder %s270, 0
      %s273 = sadd.s32 %s272, 1
      %s274 = scalar_select %p271, %s272, %s273
      %p277 = pneg %p271
      %p278 = scmp.eq.s32.totalorder %s21, 1
      %p279 = por %p277, %p278
      %p280 = scmp.ne.s32.totalorder %s272, %s275
      %p281 = scmp.eq.s32.totalorder %s21, 0
      %p282 = por %p280, %p281
      %p283 = scmp.ne.s32.totalorder %s272, %s275
      %p284 = scmp.eq.s32.totalorder %s26, 1
      %p285 = por %p283, %p284
      %p286 = scmp.ne.s32.totalorder %s275, %s276
      %p287 = scmp.eq.s32.totalorder %s26, 0
      %p288 = por %p286, %p287
      %p289 = scmp.ne.s32.totalorder %s275, %s276
      %p290 = scmp.eq.s32.totalorder %s27, 1
      %p291 = por %p289, %p290
      %p293 = scmp.ne.s32.totalorder %s276, %s292
      %p294 = scmp.eq.s32.totalorder %s27, 0
      %p295 = por %p293, %p294
      %p296 = scmp.le.s32.totalorder 1, %s21
      %p297 = scmp.lt.s32.totalorder %s21, 3
      %p298 = pnand %p296, %p297
      %p299 = pneg %p298
      // Predicated region
      $region9: #{tpu_custom_call.1} parent=5 // pred_check
        _
      $region10: #{tpu_custom_call.1} parent=5 // pred_check_branch
        %301 = sbr.rel (%p298) target = $region12
      $region11: #{tpu_custom_call.1} parent=5 // pred_region
        %s302 = ssub.s32 %s21, 1
        // Predicated region
        $region13: #{tpu_custom_call.1} parent=11 // pred_check
          %p303 = pneg %p59
        $region14: #{tpu_custom_call.1} parent=11 // pred_check_branch
          %305 = sbr.rel (%p303) target = $region16
        $region15: #{tpu_custom_call.1} parent=11 // pred_region
          %s306 = smul.u32 2, %s30
          %308 = vsyncadd [#allocation4], 0
          %s309 = smul.addr %s306, 8
          %s310 = scalar_lea.hbm %s0, %s309
          %s311 = sshll.u32 %s310, 4
          %s312 = int_to_ptr.hbm [resolvable:$true] %s311
          %s313 = sshll.u32 [#allocation3], 4
          %s314 = int_to_ptr.vmem [resolvable:$true] %s313
          %319 = dma.hbm_to_vmem [thread:$0]  %s312, 256, %s314, [#allocation4], 128, 128, 8
        $region16: #{tpu_custom_call.1} parent=11 // pred_fallthru
          _
        // Predicated region
        $region17: #{tpu_custom_call.1} parent=11 // pred_check
          %p320 = pneg %p85
        $region18: #{tpu_custom_call.1} parent=11 // pred_check_branch
          %322 = sbr.rel (%p320) target = $region20
        $region19: #{tpu_custom_call.1} parent=11 // pred_region
          %324 = vsyncadd [#allocation7], 0
          %s325 = smul.addr %s30, 4
          %s326 = scalar_lea.hbm %s1, %s325
          %s327 = sshll.u32 %s326, 4
          %s328 = int_to_ptr.hbm [resolvable:$true] %s327
          %s329 = sshll.u32 [#allocation6], 4
          %s330 = int_to_ptr.vmem [resolvable:$true] %s329
          %335 = dma.hbm_to_vmem [thread:$0]  %s328, 64, %s330, [#allocation7], 16, 16, 1
        $region20: #{tpu_custom_call.1} parent=11 // pred_fallthru
          _
        // Predicated region
        $region21: #{tpu_custom_call.1} parent=11 // pred_check
          %p336 = pneg %p106
        $region22: #{tpu_custom_call.1} parent=11 // pred_check_branch
          %338 = sbr.rel (%p336) target = $region24
        $region23: #{tpu_custom_call.1} parent=11 // pred_region
          %340 = vsyncadd [#allocation7], 0
          %s341 = sshll.u32 %s2, 4
          %s342 = int_to_ptr.hbm [resolvable:$true] %s341
          %s343 = sshll.u32 [#allocation8], 4
          %s344 = int_to_ptr.vmem [resolvable:$true] %s343
          %349 = dma.hbm_to_vmem [thread:$0]  %s342, 256, %s344, [#allocation7], 128, 128, 8
        $region24: #{tpu_custom_call.1} parent=11 // pred_fallthru
          _
      $region12: #{tpu_custom_call.1} parent=5 // pred_fallthru
        _
      %p350 = scmp.lt.s32.totalorder %s21, 2
      // Predicated region
      $region25: #{tpu_custom_call.1} parent=5 // pred_check
        %p351 = pneg %p350
      $region26: #{tpu_custom_call.1} parent=5 // pred_check_branch
        %353 = sbr.rel (%p351) target = $region28
      $region27: #{tpu_custom_call.1} parent=5 // pred_region
        // Predicated region
        $region29: #{tpu_custom_call.1} parent=27 // pred_check
          %p354 = pneg %p126
        $region30: #{tpu_custom_call.1} parent=27 // pred_check_branch
          %356 = sbr.rel (%p354) target = $region32
        $region31: #{tpu_custom_call.1} parent=27 // pred_region
          %p357 = scmp.lt.s32.totalorder %s29, 1
          %s358 = scalar_select %p357, %s29, 1
          %s359 = smul.addr %s358, 8
          %s360 = smul.addr %s359, 4
          %s361 = scalar_lea.vmem %s3, %s360
        $region32: #{tpu_custom_call.1} parent=27 // pred_fallthru
          _
        // Predicated region
        $region33: #{tpu_custom_call.1} parent=27 // pred_check
          %p362 = pneg %p152
        $region34: #{tpu_custom_call.1} parent=27 // pred_check_branch
          %364 = sbr.rel (%p362) target = $region36
        $region35: #{tpu_custom_call.1} parent=27 // pred_region
          %p365 = scmp.lt.s32.totalorder %s29, 1
          %s366 = scalar_select %p365, %s29, 1
          %s367 = smul.addr %s366, 4
          %s368 = smul.addr %s367, 4
          %s369 = scalar_lea.vmem %s4, %s368
        $region36: #{tpu_custom_call.1} parent=27 // pred_fallthru
          _
        // Predicated region
        $region37: #{tpu_custom_call.1} parent=27 // pred_check
          %p370 = pneg %p178
        $region38: #{tpu_custom_call.1} parent=27 // pred_check_branch
          %372 = sbr.rel (%p370) target = $region40
        $region39: #{tpu_custom_call.1} parent=27 // pred_region
          %s373 = sand.u32 %s21, 1
          %s374 = scalar_lea.sflag [#allocation10], %s373
          %s375 = sand.u32 %s168, 1
          %s376 = smul.addr %s375, 16
          %s377 = scalar_lea.vmem [#allocation9], %s376
          %379 = vsyncadd %s374, 0
          %s380 = smul.addr %s29, 4
          %s381 = smul.addr %s380, 4
          %s382 = scalar_lea.hbm %s5, %s381
          %s383 = sshll.u32 %s382, 4
          %s384 = int_to_ptr.hbm [resolvable:$true] %s383
          %s385 = sshll.u32 %s377, 4
          %s386 = int_to_ptr.vmem [resolvable:$true] %s385
          %391 = dma.hbm_to_vmem [thread:$0]  %s384, 256, %s386, %s374, 64, 64, 4
        $region40: #{tpu_custom_call.1} parent=27 // pred_fallthru
          _
        // Predicated region
        $region41: #{tpu_custom_call.1} parent=27 // pred_check
          %p392 = pneg %p204
        $region42: #{tpu_custom_call.1} parent=27 // pred_check_branch
          %394 = sbr.rel (%p392) target = $region44
        $region43: #{tpu_custom_call.1} parent=27 // pred_region
          %p395 = scmp.lt.s32.totalorder %s29, 1
          %s396 = scalar_select %p395, %s29, 1
          %s397 = scalar_lea.vmem %s6, %s396
        $region44: #{tpu_custom_call.1} parent=27 // pred_fallthru
          _
        // Predicated region
        $region45: #{tpu_custom_call.1} parent=27 // pred_check
          %p398 = pneg %p230
        $region46: #{tpu_custom_call.1} parent=27 // pred_check_branch
          %400 = sbr.rel (%p398) target = $region48
        $region47: #{tpu_custom_call.1} parent=27 // pred_region
          %p401 = scmp.lt.s32.totalorder %s29, 1
          %s402 = scalar_select %p401, %s29, 1
          %s403 = smul.addr %s402, 8
          %s404 = smul.addr %s403, 4
          %s405 = scalar_lea.vmem %s7, %s404
        $region48: #{tpu_custom_call.1} parent=27 // pred_fallthru
          _
        // Predicated region
        $region49: #{tpu_custom_call.1} parent=27 // pred_check
          %p406 = pneg %p256
        $region50: #{tpu_custom_call.1} parent=27 // pred_check_branch
          %408 = sbr.rel (%p406) target = $region52
        $region51: #{tpu_custom_call.1} parent=27 // pred_region
          %s409 = sand.u32 %s21, 1
          %s410 = scalar_lea.sflag [#allocation10], %s409
          %s411 = sand.u32 %s246, 1
          %s412 = smul.addr %s411, 8
          %s413 = scalar_lea.vmem [#allocation11], %s412
          %415 = vsyncadd %s410, 0
          %s416 = smul.addr %s29, 8
          %s417 = scalar_lea.hbm %s8, %s416
          %s419 = sshll.u32 %s417, 4
          %s420 = int_to_ptr.hbm [resolvable:$true] %s419
          %s421 = sshll.u32 %s413, 4
          %s422 = int_to_ptr.vmem [resolvable:$true] %s421
          %424 = dma.hbm_to_vmem [thread:$0]  %s420, 128, %s422, %s410
        $region52: #{tpu_custom_call.1} parent=27 // pred_fallthru
          _
      $region28: #{tpu_custom_call.1} parent=5 // pred_fallthru
        _
      %p425 = scmp.le.s32.totalorder 1, %s21
      %p426 = scmp.lt.s32.totalorder %s21, 3
      %p427 = pnand %p425, %p426
      %p428 = pneg %p427
      // Predicated region
      $region53: #{tpu_custom_call.1} parent=5 // pred_check
        _
      $region54: #{tpu_custom_call.1} parent=5 // pred_check_branch
        %430 = sbr.rel (%p427) target = $region56
      $region55: #{tpu_custom_call.1} parent=5 // pred_region
        %s431 = ssub.s32 %s21, 1
        // Predicated region
        $region57: #{tpu_custom_call.1} parent=55 // pred_check
          %p432 = pneg %p59
        $region58: #{tpu_custom_call.1} parent=55 // pred_check_branch
          %434 = sbr.rel (%p432) target = $region60
        $region59: #{tpu_custom_call.1} parent=55 // pred_region
          %436 = dma.done [#allocation4], 256
        $region60: #{tpu_custom_call.1} parent=55 // pred_fallthru
          _
        // Predicated region
        $region61: #{tpu_custom_call.1} parent=55 // pred_check
          %p437 = pneg %p85
        $region62: #{tpu_custom_call.1} parent=55 // pred_check_branch
          %439 = sbr.rel (%p437) target = $region64
        $region63: #{tpu_custom_call.1} parent=55 // pred_region
          %441 = dma.done [#allocation7], 64
        $region64: #{tpu_custom_call.1} parent=55 // pred_fallthru
          _
        // Predicated region
        $region65: #{tpu_custom_call.1} parent=55 // pred_check
          %p442 = pneg %p106
        $region66: #{tpu_custom_call.1} parent=55 // pred_check_branch
          %444 = sbr.rel (%p442) target = $region68
        $region67: #{tpu_custom_call.1} parent=55 // pred_region
          %446 = dma.done [#allocation7], 256
        $region68: #{tpu_custom_call.1} parent=55 // pred_fallthru
          _
        %s447 = sand.u32 %s26, 1
        %s448 = scalar_lea.sflag [#allocation10], %s447
        %s449 = sand.u32 %s171, 1
        %s450 = smul.addr %s449, 16
        %s451 = scalar_lea.vmem [#allocation9], %s450
        // Predicated region
        $region69: #{tpu_custom_call.1} parent=55 // pred_check
          %p452 = pneg %p184
        $region70: #{tpu_custom_call.1} parent=55 // pred_check_branch
          %454 = sbr.rel (%p452) target = $region72
        $region71: #{tpu_custom_call.1} parent=55 // pred_region
          %456 = dma.done %s448, 256
        $region72: #{tpu_custom_call.1} parent=55 // pred_fallthru
          _
        %s457 = sand.u32 %s26, 1
        %s458 = scalar_lea.sflag [#allocation10], %s457
        %s459 = sand.u32 %s249, 1
        %s460 = smul.addr %s459, 8
        %s461 = scalar_lea.vmem [#allocation11], %s460
        // Predicated region
        $region73: #{tpu_custom_call.1} parent=55 // pred_check
          %p462 = pneg %p262
        $region74: #{tpu_custom_call.1} parent=55 // pred_check_branch
          %464 = sbr.rel (%p462) target = $region76
        $region75: #{tpu_custom_call.1} parent=55 // pred_region
          %466 = dma.done %s458, 128
        $region76: #{tpu_custom_call.1} parent=55 // pred_fallthru
          _
        %p467 = pneg %p59
        %p468 = pneg %p56
        %p469 = pneg %p85
        %p470 = pneg %p82
        %p471 = pneg %p106
        %p472 = pneg %p103
        %p473 = scmp.lt.s32.totalorder %s31, 1
        %s474 = scalar_select %p473, %s31, 1
        %s475 = smul.addr %s474, 8
        %s476 = smul.addr %s475, 4
        %s477 = scalar_lea.vmem %s3, %s476
        %p478 = pneg %p132
        %p479 = pneg %p129
        %p480 = scmp.lt.s32.totalorder %s31, 1
        %s481 = scalar_select %p480, %s31, 1
        %s482 = smul.addr %s481, 4
        %s483 = smul.addr %s482, 4
        %s484 = scalar_lea.vmem %s4, %s483
        %p485 = pneg %p158
        %p486 = pneg %p155
        %s487 = sand.u32 %s26, 1
        %s488 = scalar_lea.sflag [#allocation10], %s487
        %s489 = sand.u32 %s171, 1
        %s490 = smul.addr %s489, 16
        %s491 = scalar_lea.vmem [#allocation9], %s490
        %p492 = pneg %p184
        %p493 = pneg %p181
        %p494 = scmp.lt.s32.totalorder %s31, 1
        %s495 = scalar_select %p494, %s31, 1
        %s496 = scalar_lea.vmem %s6, %s495
        %p497 = pneg %p210
        %p498 = pneg %p207
        %p499 = scmp.lt.s32.totalorder %s31, 1
        %s500 = scalar_select %p499, %s31, 1
        %s501 = smul.addr %s500, 8
        %s502 = smul.addr %s501, 4
        %s503 = scalar_lea.vmem %s7, %s502
        %p504 = pneg %p236
        %p505 = pneg %p233
        %s506 = sand.u32 %s26, 1
        %s507 = scalar_lea.sflag [#allocation10], %s506
        %s508 = sand.u32 %s249, 1
        %s509 = smul.addr %s508, 8
        %s510 = scalar_lea.vmem [#allocation11], %s509
        %p511 = pneg %p262
        %p512 = pneg %p259
        %p513 = pneg %p288
        %p514 = pneg %p285
        %s515 = smul.u32 2, %s30
        %p516 = scmp.lt.s32.totalorder %s31, 1
        %s517 = scalar_select %p516, %s31, 1
        %s518 = smul.addr %s517, 8
        %s519 = smul.addr %s518, 4
        %s520 = scalar_lea.vmem %s3, %s519
        %p521 = scmp.lt.s32.totalorder %s31, 1
        %s522 = scalar_select %p521, %s31, 1
        %s523 = smul.addr %s522, 4
        %s524 = smul.addr %s523, 4
        %s525 = scalar_lea.vmem %s4, %s524
        %p526 = scmp.lt.s32.totalorder %s31, 1
        %s527 = scalar_select %p526, %s31, 1
        %s528 = scalar_lea.vmem %s6, %s527
        %p529 = scmp.lt.s32.totalorder %s31, 1
        %s530 = scalar_select %p529, %s31, 1
        %s531 = smul.addr %s530, 8
        %s532 = smul.addr %s531, 4
        %s533 = scalar_lea.vmem %s7, %s532
        %s534 = smul.u32 2, %s30
        %p536 = scmp.eq.s32.totalorder %s31, 0
        // Predicated region
        $region77: #{tpu_custom_call.1} parent=55 // pred_check
          %p537 = pneg %p536
        $region78: #{tpu_custom_call.1} parent=55 // pred_check_branch
          %539 = sbr.rel (%p537) target = $region80
        $region79: #{tpu_custom_call.1} parent=55 // pred_region
          %v540 = vld [vmem:[#allocation3] sm:$0xff]
          %v541 = vld [vmem:[#allocation3 + $0x8] sm:$0xff]
          %v542 = vld [vmem:[#allocation8] sm:$0xff]
          %v543 = vld [vmem:[#allocation8 + $0x8] sm:$0xff]
          %v544 = vadd.f32 %v540, %v542
          %v545 = vadd.f32 %v541, %v543
          %vm546 = vcmask 261120
          %547 = vst.msk [vmem:[#allocation2] sm:$0xff] %vm546, %v544
          %548 = vst.msk [vmem:[#allocation2 + $0x8] sm:$0xff] %vm546, %v545
        $region80: #{tpu_custom_call.1} parent=55 // pred_fallthru
          _
        %v549 = vld [vmem:[#allocation2] sm:$0xff]
        %v550 = vld [vmem:[#allocation2 + $0x8] sm:$0xff]
        %v551 = vpack.c.bf16 %v549, %v549
        %v552 = vpack.c.bf16 %v550, %v550
        %v553 = vld [vmem:[%s520] sm:$0xf]
        %v554 = vld [vmem:[%s520 + $0x4] sm:$0xf]
        %v555 = vld [vmem:[%s520 + $0x8] sm:$0xf]
        %v556 = vld [vmem:[%s520 + $0xc] sm:$0xf]
        %v557 = vld [vmem:[%s520 + $0x10] sm:$0xf]
        %v558 = vld [vmem:[%s520 + $0x14] sm:$0xf]
        %v559 = vld [vmem:[%s520 + $0x18] sm:$0xf]
        %v560 = vld [vmem:[%s520 + $0x1c] sm:$0xf]
        %v563 = vunpack.c.l.b16 %v551
        %v564 = vunpack.c.l.b16 %v552
        %v565 = vpack.c.b16 %v564, %v563
        %v570 = vunpack.c.l.b16 %v553
        %v571 = vunpack.c.l.b16 %v554
        %v572 = vunpack.c.l.b16 %v555
        %v573 = vunpack.c.l.b16 %v556
        %v574 = vpack.c.b16 %v571, %v570
        %v575 = vpack.c.b16 %v573, %v572
        %vm578 = vcmask 261120
        %v580 = vsel %vm578, %v565, 0
        %582 = vmatpush.bf16.msra.mxu0 0
        %583 = vmatpush.bf16.msra.mxu0 0
        %584 = vmatpush.bf16.msra.mxu0 0
        %585 = vmatpush.bf16.msra.mxu0 0
        %586 = vmatpush.bf16.msra.mxu0 0
        %587 = vmatpush.bf16.msra.mxu0 0
        %588 = vmatpush.bf16.msra.mxu0 %v575
        %589 = vmatpush.bf16.msra.mxu0 %v574
        %590 = vmatmul.bf16.gmra.mxu0 %v580
        %v591 = vpop.f32.mrf.mxu0
        %v592 = vadd.f32 0.0, %v591
        %v593 = vpop.f32.mrf.mxu0
        %v594 = vadd.f32 0.0, %v593
        %595 = vdwg.mxu0
        %v600 = vunpack.c.l.b16 %v557
        %v601 = vunpack.c.l.b16 %v558
        %v602 = vunpack.c.l.b16 %v559
        %v603 = vunpack.c.l.b16 %v560
        %v604 = vpack.c.b16 %v601, %v600
        %v605 = vpack.c.b16 %v603, %v602
        %608 = vmatpush.bf16.msra.mxu0 0
        %609 = vmatpush.bf16.msra.mxu0 0
        %610 = vmatpush.bf16.msra.mxu0 0
        %611 = vmatpush.bf16.msra.mxu0 0
        %612 = vmatpush.bf16.msra.mxu0 0
        %613 = vmatpush.bf16.msra.mxu0 0
        %614 = vmatpush.bf16.msra.mxu0 %v605
        %615 = vmatpush.bf16.msra.mxu0 %v604
        %616 = vmatmul.bf16.gmra.mxu0 %v580
        %v617 = vpop.f32.mrf.mxu0
        %v618 = vadd.f32 0.0, %v617
        %v619 = vpop.f32.mrf.mxu0
        %v620 = vadd.f32 0.0, %v619
        %621 = vdwg.mxu0
        %v622 = vpack.c.bf16 %v592, %v592
        %v623 = vpack.c.bf16 %v594, %v594
        %v624 = vpack.c.bf16 %v618, %v618
        %v625 = vpack.c.bf16 %v620, %v620
        %v627 = vunpack.c.l.b16 %v622
        %v628 = vpack.c.b16 %v627, %v627
        %629 = vrot.lane.b32.xlu0 %v628, 112
        %v630 = vpop.permute.xlu0 %629
        %vm631 = vcmask 130048
        %v633 = vsel %vm631, %v622, 0
        %v636 = vsel %vm631, %v630, 0
        %638 = vmatpush.bf16.xpose.msra.mxu0 0
        %639 = vmatpush.bf16.xpose.msra.mxu0 0
        %640 = vmatpush.bf16.xpose.msra.mxu0 0
        %641 = vmatpush.bf16.xpose.msra.mxu0 0
        %642 = vmatpush.bf16.xpose.msra.mxu0 0
        %643 = vmatpush.bf16.xpose.msra.mxu0 0
        %644 = vmatpush.bf16.xpose.msra.mxu0 0
        %645 = vmatpush.bf16.xpose.msra.mxu0 %v636
        %646 = vmatmul.bf16.gmra.mxu0 %v633
        %v647 = vpop.f32.mrf.mxu0
        %v648 = vadd.f32 0.0, %v647
        %v649 = vpop.f32.mrf.mxu0
        %650 = vdwg.mxu0
        %v652 = vunpack.c.l.b16 %v623
        %v653 = vpack.c.b16 %v652, %v652
        %654 = vrot.lane.b32.xlu0 %v653, 112
        %v655 = vpop.permute.xlu0 %654
        %v657 = vsel %vm631, %v623, 0
        %v660 = vsel %vm631, %v655, 0
        %662 = vmatpush.bf16.xpose.msra.mxu0 0
        %663 = vmatpush.bf16.xpose.msra.mxu0 0
        %664 = vmatpush.bf16.xpose.msra.mxu0 0
        %665 = vmatpush.bf16.xpose.msra.mxu0 0
        %666 = vmatpush.bf16.xpose.msra.mxu0 0
        %667 = vmatpush.bf16.xpose.msra.mxu0 0
        %668 = vmatpush.bf16.xpose.msra.mxu0 0
        %669 = vmatpush.bf16.xpose.msra.mxu0 %v660
        %670 = vmatmul.bf16.gmra.mxu0 %v657
        %v671 = vpop.f32.mrf.mxu0
        %v672 = vadd.f32 0.0, %v671
        %v673 = vpop.f32.mrf.mxu0
        %674 = vdwg.mxu0
        %v676 = vunpack.c.l.b16 %v624
        %v677 = vpack.c.b16 %v676, %v676
        %678 = vrot.lane.b32.xlu0 %v677, 112
        %v679 = vpop.permute.xlu0 %678
        %v681 = vsel %vm631, %v624, 0
        %v684 = vsel %vm631, %v679, 0
        %686 = vmatpush.bf16.xpose.msra.mxu0 0
        %687 = vmatpush.bf16.xpose.msra.mxu0 0
        %688 = vmatpush.bf16.xpose.msra.mxu0 0
        %689 = vmatpush.bf16.xpose.msra.mxu0 0
        %690 = vmatpush.bf16.xpose.msra.mxu0 0
        %691 = vmatpush.bf16.xpose.msra.mxu0 0
        %692 = vmatpush.bf16.xpose.msra.mxu0 0
        %693 = vmatpush.bf16.xpose.msra.mxu0 %v684
        %694 = vmatmul.bf16.gmra.mxu0 %v681
        %v695 = vpop.f32.mrf.mxu0
        %v696 = vadd.f32 0.0, %v695
        %v697 = vpop.f32.mrf.mxu0
        %698 = vdwg.mxu0
        %v700 = vunpack.c.l.b16 %v625
        %v701 = vpack.c.b16 %v700, %v700
        %702 = vrot.lane.b32.xlu0 %v701, 112
        %v703 = vpop.permute.xlu0 %702
        %v705 = vsel %vm631, %v625, 0
        %v708 = vsel %vm631, %v703, 0
        %710 = vmatpush.bf16.xpose.msra.mxu0 0
        %711 = vmatpush.bf16.xpose.msra.mxu0 0
        %712 = vmatpush.bf16.xpose.msra.mxu0 0
        %713 = vmatpush.bf16.xpose.msra.mxu0 0
        %714 = vmatpush.bf16.xpose.msra.mxu0 0
        %715 = vmatpush.bf16.xpose.msra.mxu0 0
        %716 = vmatpush.bf16.xpose.msra.mxu0 0
        %717 = vmatpush.bf16.xpose.msra.mxu0 %v708
        %718 = vmatmul.bf16.gmra.mxu0 %v705
        %v719 = vpop.f32.mrf.mxu0
        %v720 = vadd.f32 0.0, %v719
        %v721 = vpop.f32.mrf.mxu0
        %722 = vdwg.mxu0
        %v723 = vmul.f32 %v648, 0.25
        %v724 = vmul.f32 %v672, 0.25
        %v725 = vmul.f32 %v696, 0.25
        %v726 = vmul.f32 %v720, 0.25
        %v727 = vld [vmem:[#allocation6] sm:$0x1]
        %v728 = vld [vmem:[#allocation6 + $0x1] sm:$0x1]
        %v729 = vld [vmem:[#allocation6 + $0x2] sm:$0x1]
        %v730 = vld [vmem:[#allocation6 + $0x3] sm:$0x1]
        %v735 = vperm.slane %v727, 0
        %v736 = vperm.slane %v728, 0
        %v737 = vperm.slane %v729, 0
        %v738 = vperm.slane %v730, 0
        %v743 = vadd.f32 %v723, %v735
        %v744 = vadd.f32 %v724, %v736
        %v745 = vadd.f32 %v725, %v737
        %v746 = vadd.f32 %v726, %v738
        %vm747 = vcmask 64512
        %v748 = vsel %vm747, %v743, -inf
        %749 = vmax.xlane.f32.xlu0 %v748
        %v750 = vpop.xlane.xlu0 %749
        %v751 = vsel %vm747, %v744, -inf
        %752 = vmax.xlane.f32.xlu0 %v751
        %v753 = vpop.xlane.xlu0 %752
        %v754 = vsel %vm747, %v745, -inf
        %755 = vmax.xlane.f32.xlu0 %v754
        %v756 = vpop.xlane.xlu0 %755
        %v757 = vsel %vm747, %v746, -inf
        %758 = vmax.xlane.f32.xlu0 %v757
        %v759 = vpop.xlane.xlu0 %758
        %v760 = vsub.f32 %v743, %v750
        %v761 = vsub.f32 %v744, %v753
        %v762 = vsub.f32 %v745, %v756
        %v763 = vsub.f32 %v746, %v759
        %v764 = vmul.f32 %v760, 1.442695
        %v765 = vpow.pop %v764
        %v766 = vmul.f32 %v761, 1.442695
        %v767 = vpow.pop %v766
        %v768 = vmul.f32 %v762, 1.442695
        %v769 = vpow.pop %v768
        %v770 = vmul.f32 %v763, 1.442695
        %v771 = vpow.pop %v770
        %v772 = vsel %vm747, %v765, 0.0
        %773 = vadd.xlane.f32.xlu0 %v772
        %v774 = vpop.xlane.xlu0 %773
        %v775 = vsel %vm747, %v767, 0.0
        %776 = vadd.xlane.f32.xlu0 %v775
        %v777 = vpop.xlane.xlu0 %776
        %v778 = vsel %vm747, %v769, 0.0
        %779 = vadd.xlane.f32.xlu0 %v778
        %v780 = vpop.xlane.xlu0 %779
        %v781 = vsel %vm747, %v771, 0.0
        %782 = vadd.xlane.f32.xlu0 %v781
        %v783 = vpop.xlane.xlu0 %782
        %v784 = vrcp.pop %v774
        %v785 = vrcp.pop %v777
        %v786 = vrcp.pop %v780
        %v787 = vrcp.pop %v783
        %v788 = vmul.f32 %v765, %v784
        %v789 = vmul.f32 %v767, %v785
        %v790 = vmul.f32 %v769, %v786
        %v791 = vmul.f32 %v771, %v787
        %v792 = vpack.c.bf16 %v788, %v788
        %v793 = vpack.c.bf16 %v789, %v789
        %v794 = vpack.c.bf16 %v790, %v790
        %v795 = vpack.c.bf16 %v791, %v791
        %796 = vrot.lane.b32.xlu0 %v628, 96
        %v797 = vpop.permute.xlu0 %796
        %v799 = vsel %vm747, %v792, 0
        %vm801 = vcmask 1043456
        %v803 = vsel %vm801, %v797, 0
        %805 = vmatpush.bf16.msra.mxu0 0
        %806 = vmatpush.bf16.msra.mxu0 0
        %807 = vmatpush.bf16.msra.mxu0 0
        %808 = vmatpush.bf16.msra.mxu0 0
        %809 = vmatpush.bf16.msra.mxu0 0
        %810 = vmatpush.bf16.msra.mxu0 0
        %811 = vmatpush.bf16.msra.mxu0 0
        %812 = vmatpush.bf16.msra.mxu0 %v803
        %813 = vmatmul.bf16.gmra.mxu0 %v799
        %v814 = vpop.f32.mrf.mxu0
        %v815 = vadd.f32 0.0, %v814
        %v816 = vpop.f32.mrf.mxu0
        %817 = vdwg.mxu0
        %818 = vrot.lane.b32.xlu0 %v653, 96
        %v819 = vpop.permute.xlu0 %818
        %v821 = vsel %vm747, %v793, 0
        %v824 = vsel %vm801, %v819, 0
        %826 = vmatpush.bf16.msra.mxu0 0
        %827 = vmatpush.bf16.msra.mxu0 0
        %828 = vmatpush.bf16.msra.mxu0 0
        %829 = vmatpush.bf16.msra.mxu0 0
        %830 = vmatpush.bf16.msra.mxu0 0
        %831 = vmatpush.bf16.msra.mxu0 0
        %832 = vmatpush.bf16.msra.mxu0 0
        %833 = vmatpush.bf16.msra.mxu0 %v824
        %834 = vmatmul.bf16.gmra.mxu0 %v821
        %v835 = vpop.f32.mrf.mxu0
        %v836 = vadd.f32 0.0, %v835
        %v837 = vpop.f32.mrf.mxu0
        %838 = vdwg.mxu0
        %839 = vrot.lane.b32.xlu0 %v677, 96
        %v840 = vpop.permute.xlu0 %839
        %v842 = vsel %vm747, %v794, 0
        %v845 = vsel %vm801, %v840, 0
        %847 = vmatpush.bf16.msra.mxu0 0
        %848 = vmatpush.bf16.msra.mxu0 0
        %849 = vmatpush.bf16.msra.mxu0 0
        %850 = vmatpush.bf16.msra.mxu0 0
        %851 = vmatpush.bf16.msra.mxu0 0
        %852 = vmatpush.bf16.msra.mxu0 0
        %853 = vmatpush.bf16.msra.mxu0 0
        %854 = vmatpush.bf16.msra.mxu0 %v845
        %855 = vmatmul.bf16.gmra.mxu0 %v842
        %v856 = vpop.f32.mrf.mxu0
        %v857 = vadd.f32 0.0, %v856
        %v858 = vpop.f32.mrf.mxu0
        %859 = vdwg.mxu0
        %860 = vrot.lane.b32.xlu0 %v701, 96
        %v861 = vpop.permute.xlu0 %860
        %v863 = vsel %vm747, %v795, 0
        %v866 = vsel %vm801, %v861, 0
        %868 = vmatpush.bf16.msra.mxu0 0
        %869 = vmatpush.bf16.msra.mxu0 0
        %870 = vmatpush.bf16.msra.mxu0 0
        %871 = vmatpush.bf16.msra.mxu0 0
        %872 = vmatpush.bf16.msra.mxu0 0
        %873 = vmatpush.bf16.msra.mxu0 0
        %874 = vmatpush.bf16.msra.mxu0 0
        %875 = vmatpush.bf16.msra.mxu0 %v866
        %876 = vmatmul.bf16.gmra.mxu0 %v863
        %v877 = vpop.f32.mrf.mxu0
        %v878 = vadd.f32 0.0, %v877
        %v879 = vpop.f32.mrf.mxu0
        %880 = vdwg.mxu0
        %v881 = vpack.c.bf16 %v815, %v815
        %v882 = vpack.c.bf16 %v836, %v836
        %v883 = vpack.c.bf16 %v857, %v857
        %v884 = vpack.c.bf16 %v878, %v878
        %v885 = vld [vmem:[%s525] sm:$0xf]
        %v886 = vld [vmem:[%s525 + $0x4] sm:$0xf]
        %v887 = vld [vmem:[%s525 + $0x8] sm:$0xf]
        %v888 = vld [vmem:[%s525 + $0xc] sm:$0xf]
        %v891 = vunpack.c.l.b16 %v881
        %v892 = vunpack.c.l.b16 %v882
        %v893 = vpack.c.b16 %v892, %v891
        %v896 = vunpack.c.l.b16 %v885
        %v897 = vunpack.c.l.b16 %v886
        %v898 = vpack.c.b16 %v897, %v896
        %v901 = vsel %vm631, %v893, 0
        %903 = vmatpush.bf16.msra.mxu0 0
        %904 = vmatpush.bf16.msra.mxu0 0
        %905 = vmatpush.bf16.msra.mxu0 0
        %906 = vmatpush.bf16.msra.mxu0 0
        %907 = vmatpush.bf16.msra.mxu0 0
        %908 = vmatpush.bf16.msra.mxu0 0
        %909 = vmatpush.bf16.msra.mxu0 0
        %910 = vmatpush.bf16.msra.mxu0 %v898
        %911 = vmatmul.bf16.gmra.mxu0 %v901
        %v912 = vpop.f32.mrf.mxu0
        %v913 = vadd.f32 0.0, %v912
        %v914 = vpop.f32.mrf.mxu0
        %v915 = vadd.f32 0.0, %v914
        %916 = vdwg.mxu0
        %v919 = vunpack.c.l.b16 %v883
        %v920 = vunpack.c.l.b16 %v884
        %v921 = vpack.c.b16 %v920, %v919
        %v924 = vunpack.c.l.b16 %v887
        %v925 = vunpack.c.l.b16 %v888
        %v926 = vpack.c.b16 %v925, %v924
        %v929 = vsel %vm631, %v921, 0
        %931 = vmatpush.bf16.msra.mxu0 0
        %932 = vmatpush.bf16.msra.mxu0 0
        %933 = vmatpush.bf16.msra.mxu0 0
        %934 = vmatpush.bf16.msra.mxu0 0
        %935 = vmatpush.bf16.msra.mxu0 0
        %936 = vmatpush.bf16.msra.mxu0 0
        %937 = vmatpush.bf16.msra.mxu0 0
        %938 = vmatpush.bf16.msra.mxu0 %v926
        %939 = vmatmul.bf16.gmra.mxu0 %v929
        %v940 = vpop.f32.mrf.mxu0
        %v941 = vadd.f32 0.0, %v940
        %v942 = vpop.f32.mrf.mxu0
        %v943 = vadd.f32 0.0, %v942
        %944 = vdwg.mxu0
        %v945 = vsel %vm578, %v913, 0.0
        %v946 = vsel %vm578, %v941, 0.0
        %v947 = vadd.f32 %v945, %v946
        %v948 = vsel %vm578, %v915, 0.0
        %v949 = vsel %vm578, %v943, 0.0
        %v950 = vadd.f32 %v948, %v949
        %v951 = vld [vmem:[%s461] sm:$0xff]
        %v952 = vadd.f32 %v947, %v549
        %v953 = vadd.f32 %v950, %v550
        %v954 = vsel %vm578, %v952, 0.0
        %955 = vadd.xlane.f32.xlu0 %v954
        %v956 = vpop.xlane.xlu0 %955
        %v957 = vsel %vm578, %v953, 0.0
        %958 = vadd.xlane.f32.xlu0 %v957
        %v959 = vpop.xlane.xlu0 %958
        %v960 = vrcp.pop 32.0
        %v961 = vmul.f32 32.0, %v960
        %v962 = vsub.f32 1.0, %v961
        %v963 = vmul.f32 %v960, %v962
        %v964 = vadd.f32 %v960, %v963
        %vm965 = vweird.f32 %v960
        %v966 = vsel %vm965, %v960, %v964
        %v967 = vmul.f32 %v956, %v966
        %v968 = vmul.f32 %v959, %v966
        %v969 = vsub.f32 %v952, %v967
        %v970 = vsub.f32 %v953, %v968
        %v971 = vmul.f32 %v969, %v969
        %v972 = vmul.f32 %v970, %v970
        %v973 = vsel %vm578, %v971, 0.0
        %974 = vadd.xlane.f32.xlu0 %v973
        %v975 = vpop.xlane.xlu0 %974
        %v976 = vsel %vm578, %v972, 0.0
        %977 = vadd.xlane.f32.xlu0 %v976
        %v978 = vpop.xlane.xlu0 %977
        %v979 = vmul.f32 %v975, %v966
        %v980 = vmul.f32 %v978, %v966
        %v981 = vadd.f32 %v979, 1e-06
        %v982 = vadd.f32 %v980, 1e-06
        %v983 = vrsqrt.pop %v981
        %v984 = vmul.f32 %v983, %v981
        %v985 = vmul.f32 %v984, %v983
        %v986 = vmul.f32 0.5, %v985
        %v987 = vsub.f32 1.5, %v986
        %v988 = vmul.f32 %v983, %v987
        %vm989 = vweird.f32 %v981
        %vm990 = vweird.f32 %v983
        %vm991 = vmor %vm989, %vm990
        %v992 = vsel %vm991, %v983, %v988
        %v993 = vrsqrt.pop %v982
        %v994 = vmul.f32 %v993, %v982
        %v995 = vmul.f32 %v994, %v993
        %v996 = vmul.f32 0.5, %v995
        %v997 = vsub.f32 1.5, %v996
        %v998 = vmul.f32 %v993, %v997
        %vm999 = vweird.f32 %v982
        %vm1000 = vweird.f32 %v993
        %vm1001 = vmor %vm999, %vm1000
        %v1002 = vsel %vm1001, %v993, %v998
        %v1003 = vmul.f32 %v969, %v992
        %v1004 = vmul.f32 %v970, %v1002
        %v1005 = vperm.slane %v951, 0
        %v1006 = vmul.f32 %v1003, %v1005
        %v1007 = vmul.f32 %v1004, %v1005
        %v1008 = vperm.slane %v951, 1
        %v1009 = vadd.f32 %v1006, %v1008
        %v1010 = vadd.f32 %v1007, %v1008
        %v1011 = vpack.c.bf16 %v1010, %v1009
        %v1012 = vld [vmem:[%s451] sm:$0xf]
        %v1013 = vld [vmem:[%s451 + $0x4] sm:$0xf]
        %v1014 = vld [vmem:[%s451 + $0x8] sm:$0xf]
        %v1015 = vld [vmem:[%s451 + $0xc] sm:$0xf]
        %v1016 = vld [vmem:[%s528] sm:$0x1]
        %v1018 = vperm.slane %v1016, 0
        %v1024 = vunpack.c.l.b16 %v1012
        %v1025 = vunpack.c.l.b16 %v1013
        %v1026 = vunpack.c.l.b16 %v1014
        %v1027 = vunpack.c.l.b16 %v1015
        %v1028 = vpack.c.b16 %v1025, %v1024
        %v1029 = vpack.c.b16 %v1027, %v1026
        %v1033 = vsel %vm578, %v1011, 0
        %1035 = vmatpush.bf16.msra.mxu0 0
        %1036 = vmatpush.bf16.msra.mxu0 0
        %1037 = vmatpush.bf16.msra.mxu0 0
        %1038 = vmatpush.bf16.msra.mxu0 0
        %1039 = vmatpush.bf16.msra.mxu0 0
        %1040 = vmatpush.bf16.msra.mxu0 0
        %1041 = vmatpush.bf16.msra.mxu0 %v1029
        %1042 = vmatpush.bf16.msra.mxu0 %v1028
        %1043 = vmatmul.bf16.gmra.mxu0 %v1033
        %v1044 = vpop.f32.mrf.mxu0
        %v1045 = vadd.f32 %v1018, %v1044
        %v1046 = vpop.f32.mrf.mxu0
        %v1047 = vadd.f32 %v1018, %v1046
        %1048 = vdwg.mxu0
        %v1049 = vmax.f32 %v1045, 0.0
        %v1050 = vmax.f32 %v1047, 0.0
        %v1051 = vpack.c.bf16 %v1050, %v1049
        %v1052 = vld [vmem:[%s533] sm:$0xf]
        %v1053 = vld [vmem:[%s533 + $0x4] sm:$0xf]
        %v1054 = vld [vmem:[%s533 + $0x8] sm:$0xf]
        %v1055 = vld [vmem:[%s533 + $0xc] sm:$0xf]
        %v1056 = vld [vmem:[%s533 + $0x10] sm:$0xf]
        %v1057 = vld [vmem:[%s533 + $0x14] sm:$0xf]
        %v1058 = vld [vmem:[%s533 + $0x18] sm:$0xf]
        %v1059 = vld [vmem:[%s533 + $0x1c] sm:$0xf]
        %v1060 = vperm.slane %v951, 4
        %v1069 = vunpack.c.l.b16 %v1052
        %v1070 = vunpack.c.l.b16 %v1053
        %v1071 = vunpack.c.l.b16 %v1054
        %v1072 = vunpack.c.l.b16 %v1055
        %v1073 = vunpack.c.l.b16 %v1056
        %v1074 = vunpack.c.l.b16 %v1057
        %v1075 = vunpack.c.l.b16 %v1058
        %v1076 = vunpack.c.l.b16 %v1059
        %v1077 = vpack.c.b16 %v1070, %v1069
        %v1078 = vpack.c.b16 %v1072, %v1071
        %v1079 = vpack.c.b16 %v1074, %v1073
        %v1080 = vpack.c.b16 %v1076, %v1075
        %vm1085 = vcmask 523264
        %v1087 = vsel %vm1085, %v1051, 0
        %1089 = vmatpush.bf16.msra.mxu0 0
        %1090 = vmatpush.bf16.msra.mxu0 0
        %1091 = vmatpush.bf16.msra.mxu0 0
        %1092 = vmatpush.bf16.msra.mxu0 0
        %1093 = vmatpush.bf16.msra.mxu0 %v1080
        %1094 = vmatpush.bf16.msra.mxu0 %v1079
        %1095 = vmatpush.bf16.msra.mxu0 %v1078
        %1096 = vmatpush.bf16.msra.mxu0 %v1077
        %1097 = vmatmul.bf16.gmra.mxu0 %v1087
        %v1098 = vpop.f32.mrf.mxu0
        %v1099 = vadd.f32 %v1060, %v1098
        %v1100 = vpop.f32.mrf.mxu0
        %v1101 = vadd.f32 %v1060, %v1100
        %1102 = vdwg.mxu0
        %v1103 = vadd.f32 %v1099, %v1009
        %v1104 = vadd.f32 %v1101, %v1010
        %v1105 = vsel %vm578, %v1103, 0.0
        %1106 = vadd.xlane.f32.xlu0 %v1105
        %v1107 = vpop.xlane.xlu0 %1106
        %v1108 = vsel %vm578, %v1104, 0.0
        %1109 = vadd.xlane.f32.xlu0 %v1108
        %v1110 = vpop.xlane.xlu0 %1109
        %v1111 = vmul.f32 %v1107, %v966
        %v1112 = vmul.f32 %v1110, %v966
        %v1113 = vsub.f32 %v1103, %v1111
        %v1114 = vsub.f32 %v1104, %v1112
        %v1115 = vmul.f32 %v1113, %v1113
        %v1116 = vmul.f32 %v1114, %v1114
        %v1117 = vsel %vm578, %v1115, 0.0
        %1118 = vadd.xlane.f32.xlu0 %v1117
        %v1119 = vpop.xlane.xlu0 %1118
        %v1120 = vsel %vm578, %v1116, 0.0
        %1121 = vadd.xlane.f32.xlu0 %v1120
        %v1122 = vpop.xlane.xlu0 %1121
        %v1123 = vmul.f32 %v1119, %v966
        %v1124 = vmul.f32 %v1122, %v966
        %v1125 = vadd.f32 %v1123, 1e-06
        %v1126 = vadd.f32 %v1124, 1e-06
        %v1127 = vrsqrt.pop %v1125
        %v1128 = vmul.f32 %v1127, %v1125
        %v1129 = vmul.f32 %v1128, %v1127
        %v1130 = vmul.f32 0.5, %v1129
        %v1131 = vsub.f32 1.5, %v1130
        %v1132 = vmul.f32 %v1127, %v1131
        %vm1133 = vweird.f32 %v1125
        %vm1134 = vweird.f32 %v1127
        %vm1135 = vmor %vm1133, %vm1134
        %v1136 = vsel %vm1135, %v1127, %v1132
        %v1137 = vrsqrt.pop %v1126
        %v1138 = vmul.f32 %v1137, %v1126
        %v1139 = vmul.f32 %v1138, %v1137
        %v1140 = vmul.f32 0.5, %v1139
        %v1141 = vsub.f32 1.5, %v1140
        %v1142 = vmul.f32 %v1137, %v1141
        %vm1143 = vweird.f32 %v1126
        %vm1144 = vweird.f32 %v1137
        %vm1145 = vmor %vm1143, %vm1144
        %v1146 = vsel %vm1145, %v1137, %v1142
        %v1147 = vmul.f32 %v1113, %v1136
        %v1148 = vmul.f32 %v1114, %v1146
        %v1149 = vperm.slane %v951, 2
        %v1150 = vmul.f32 %v1147, %v1149
        %v1151 = vmul.f32 %v1148, %v1149
        %v1152 = vperm.slane %v951, 3
        %v1153 = vadd.f32 %v1150, %v1152
        %v1154 = vadd.f32 %v1151, %v1152
        %1155 = vst.msk [vmem:[#allocation2] sm:$0xff] %vm578, %v1153
        %1156 = vst.msk [vmem:[#allocation2 + $0x8] sm:$0xff] %vm578, %v1154
        %p1157 = scmp.eq.s32.totalorder %s31, 1
        // Predicated region
        $region81: #{tpu_custom_call.1} parent=55 // pred_check
          %p1158 = pneg %p1157
        $region82: #{tpu_custom_call.1} parent=55 // pred_check_branch
          %1160 = sbr.rel (%p1158) target = $region84
        $region83: #{tpu_custom_call.1} parent=55 // pred_region
          %1161 = vst.msk [vmem:[#allocation12] sm:$0xff] %vm578, %v1153
          %1162 = vst.msk [vmem:[#allocation12 + $0x8] sm:$0xff] %vm578, %v1154
        $region84: #{tpu_custom_call.1} parent=55 // pred_fallthru
          _
        // Predicated region
        $region85: #{tpu_custom_call.1} parent=55 // pred_check
          %p1163 = pneg %p285
        $region86: #{tpu_custom_call.1} parent=55 // pred_check_branch
          %1165 = sbr.rel (%p1163) target = $region88
        $region87: #{tpu_custom_call.1} parent=55 // pred_region
          %s1166 = smul.u32 2, %s30
          %1168 = vsyncadd [#allocation5], 0
          %s1169 = smul.addr %s1166, 8
          %s1170 = scalar_lea.hbm %s9, %s1169
          %s1171 = sshll.u32 [#allocation12], 4
          %s1172 = int_to_ptr.vmem [resolvable:$true] %s1171
          %s1173 = sshll.u32 %s1170, 4
          %s1174 = int_to_ptr.hbm [resolvable:$true] %s1173
          %1179 = dma.vmem_to_hbm [thread:$0]  %s1172, 256, %s1174, [#allocation5], 128, 128, 8
        $region88: #{tpu_custom_call.1} parent=55 // pred_fallthru
          _
        // Predicated region
        $region89: #{tpu_custom_call.1} parent=55 // pred_check
          %p1180 = pneg %p285
        $region90: #{tpu_custom_call.1} parent=55 // pred_check_branch
          %1182 = sbr.rel (%p1180) target = $region92
        $region91: #{tpu_custom_call.1} parent=55 // pred_region
          %1184 = dma.done [#allocation5], 256
        $region92: #{tpu_custom_call.1} parent=55 // pred_fallthru
          _
      $region56: #{tpu_custom_call.1} parent=5 // pred_fallthru
        _
      %p1185 = scmp.le.s32.totalorder 2, %s21
      // Predicated region
      $region93: #{tpu_custom_call.1} parent=5 // pred_check
        %p1186 = pneg %p1185
      $region94: #{tpu_custom_call.1} parent=5 // pred_check_branch
        %1188 = sbr.rel (%p1186) target = $region96
      $region95: #{tpu_custom_call.1} parent=5 // pred_region
        %s1189 = ssub.s32 %s21, 2
      $region96: #{tpu_custom_call.1} parent=5 // pred_fallthru
        _
    $region6: #{tpu_custom_call.1} parent=1 // loop_footer
      %s25 = sadd.s32 1, %s21
    $region7: #{tpu_custom_call.1} parent=1 // loop_footer_branch
      %20 = sbr.rel target = $region3
    $region8: #{tpu_custom_call.1} parent=1 // loop_exit
      _
    %1190 = vsyncpa [#allocation4], 1
    %s1191 = scalar_lea.sflag [#allocation4], 1
    %1192 = vsyncpa %s1191, 1
    %1193 = vsyncpa [#allocation7], 1
    %1194 = vsyncpa [#allocation10], 1
    %s1195 = scalar_lea.sflag [#allocation10], 1
    %1196 = vsyncpa %s1195, 1
    %1197 = vsyncpa [#allocation5], 1
    %s1198 = scalar_lea.sflag [#allocation5], 1
    %1199 = vsyncpa %s1198, 1

</llo_original>
